<compile_context>
chip_gen: v6e
topology: v6e:2x2x1
jax: 0.10.0
libtpu: 0.0.40
codegen_flags: <defaults>
</compile_context>

<pallas_src>
import functools

import jax
import jax.numpy as jnp
from jax.experimental import pallas as pl
from jax.experimental.pallas import tpu as pltpu


_GELU_C = 0.7978845608028654  # sqrt(2/pi)


def _gelu(x):
    return 0.5 * x * (1.0 + jnp.tanh(_GELU_C * (x + 0.044715 * (x * x * x))))


def _mlp_kernel(block_num,
                x_ref, xa_ref, t_ref,
                w_in_a_ref, w_in_b_ref, b_in_ref,
                w1_ref, s1_ref, c1_ref,
                w2_ref, s2_ref, c2_ref,
                w_out_ref, b_out_ref,
                out_ref):
    # fc_in on concat(x_, t), fused as a split matmul (no materialized concat).
    h = (jnp.dot(xa_ref[...], w_in_a_ref[...], preferred_element_type=jnp.float32)
         + jnp.dot(t_ref[...], w_in_b_ref[...], preferred_element_type=jnp.float32)
         + b_in_ref[...])

    # Residual blocks; block_num is a small static int -> unrolled Python loop.
    for i in range(block_num):
        ident = h
        z = jnp.dot(h, w1_ref[i], preferred_element_type=jnp.float32)
        z = z * s1_ref[i] + c1_ref[i]          # folded eval-mode BatchNorm1d
        z = _gelu(z)
        z = jnp.dot(z, w2_ref[i], preferred_element_type=jnp.float32)
        z = z * s2_ref[i] + c2_ref[i]
        h = _gelu(z + ident)

    y = jnp.dot(h, w_out_ref[...], preferred_element_type=jnp.float32) + b_out_ref[...]
    out_ref[...] = (y + x_ref[...]).astype(out_ref.dtype)


def mlp_forward(x, x_, t, params):
    """x: (B, 7) residual input; x_: (B, d1); t: (B, d2); returns (B, 7)."""
    B, out_dim = x.shape
    d1 = x_.shape[1]
    d2 = t.shape[1]
    block_num = params["w1"].shape[0]
    assert B % 8 == 0, "batch must be a multiple of 8 for TPU sublane tiling"

    # Batch tile: largest tile (<=512 rows) that divides B while still giving >=2
    # grid steps (double-buffered DMA/compute overlap, bounded VMEM use).
    tb = B
    for cand in (512, 256, 128, 64, 32, 16, 8):
        if cand <= B and B % cand == 0 and (B // cand) >= 2:
            tb = cand
            break
    grid = (B // tb,)

    w_in_a = params["w_in"][:d1]       # (d1, hid)
    w_in_b = params["w_in"][d1:]       # (d2, hid)

    def batch_spec(cols):
        return pl.BlockSpec((tb, cols), lambda i: (i, 0))

    def full2(a):
        return pl.BlockSpec(a.shape, lambda i: (0, 0))

    def full3(a):
        return pl.BlockSpec(a.shape, lambda i: (0, 0, 0))

    kernel = functools.partial(_mlp_kernel, block_num)

    return pl.pallas_call(
        kernel,
        out_shape=jax.ShapeDtypeStruct((B, out_dim), x.dtype),
        grid=grid,
        in_specs=[
            batch_spec(out_dim),                       # x  (final residual identity)
            batch_spec(d1),                            # x_
            batch_spec(d2),                            # t
            full2(w_in_a), full2(w_in_b), full2(params["b_in"]),
            full3(params["w1"]), full3(params["s1"]), full3(params["c1"]),
            full3(params["w2"]), full3(params["s2"]), full3(params["c2"]),
            full2(params["w_out"]), full2(params["b_out"]),
        ],
        out_specs=batch_spec(out_dim),
        compiler_params=pltpu.CompilerParams(
            dimension_semantics=("parallel",),         # shard batch tiles across TCs
        ),
    )(x, x_, t,
      w_in_a, w_in_b, params["b_in"],
      params["w1"], params["s1"], params["c1"],
      params["w2"], params["s2"], params["c2"],
      params["w_out"], params["b_out"])


def init_params(key, in_dim, hid_dim, out_dim, block_num, eps=1e-5):
    ks = jax.random.split(key, 8)

    def nrm(k, shape, scale):
        return scale * jax.random.normal(k, shape, dtype=jnp.float32)

    w_in = nrm(ks[0], (in_dim, hid_dim), 1.0 / jnp.sqrt(in_dim))
    b_in = nrm(ks[1], (1, hid_dim), 0.02)
    w1 = nrm(ks[2], (block_num, hid_dim, hid_dim), 1.0 / jnp.sqrt(hid_dim))
    w2 = nrm(ks[3], (block_num, hid_dim, hid_dim), 1.0 / jnp.sqrt(hid_dim))

    # Eval-mode BatchNorm1d params per block (gamma, beta, running mean/var),
    # folded into per-feature scale/shift: y = x * s + c.
    def bn(k):
        kg, kb, km, kv = jax.random.split(k, 4)
        gamma = 1.0 + 0.1 * jax.random.normal(kg, (block_num, 1, hid_dim), jnp.float32)
        beta = 0.05 * jax.random.normal(kb, (block_num, 1, hid_dim), jnp.float32)
        mean = 0.1 * jax.random.normal(km, (block_num, 1, hid_dim), jnp.float32)
        var = 0.5 + jax.random.uniform(kv, (block_num, 1, hid_dim), jnp.float32)
        s = gamma * jax.lax.rsqrt(var + eps)
        c = beta - mean * s
        return s, c

    s1, c1 = bn(ks[4])
    s2, c2 = bn(ks[5])
    w_out = nrm(ks[6], (hid_dim, out_dim), 1.0 / jnp.sqrt(hid_dim))
    b_out = nrm(ks[7], (1, out_dim), 0.02)
    return dict(w_in=w_in, b_in=b_in, w1=w1, s1=s1, c1=c1,
                w2=w2, s2=s2, c2=c2, w_out=w_out, b_out=b_out)


def _reference(x, x_, t, params):
    """Pure-JAX mirror of the PyTorch forward (eval-mode BN, tanh GELU)."""
    h = jnp.concatenate([x_, t], axis=1) @ params["w_in"] + params["b_in"]
    block_num = params["w1"].shape[0]
    for i in range(block_num):
        ident = h
        z = h @ params["w1"][i]
        z = z * params["s1"][i] + params["c1"][i]
        z = _gelu(z)
        z = z @ params["w2"][i]
        z = z * params["s2"][i] + params["c2"][i]
        h = _gelu(z + ident)
    return h @ params["w_out"] + params["b_out"] + x


if __name__ == "__main__":
    key = jax.random.PRNGKey(0)

    B = 256          # batch
    out_dim = 7      # fc_out width; residual add forces x.shape[1] == 7
    d1 = 8           # x_ feature width
    t_bits = 8       # binarized timestep width (dec2bin output)
    in_dim = d1 + t_bits
    hid_dim = 128    # lane-dense hidden width
    block_num = 2

    kx, kxa, kt, kp = jax.random.split(key, 4)
    x = jax.random.normal(kx, (B, out_dim), dtype=jnp.float32)
    x_ = jax.random.normal(kxa, (B, d1), dtype=jnp.float32)
    t = jax.random.normal(kt, (B, t_bits), dtype=jnp.float32)
    params = init_params(kp, in_dim, hid_dim, out_dim, block_num)

    out = jax.block_until_ready(mlp_forward(x, x_, t, params))
    ref = jax.block_until_ready(_reference(x, x_, t, params))

    assert out.shape == (B, out_dim), out.shape
    assert jnp.allclose(out, ref, atol=1e-3, rtol=1e-3), \
        float(jnp.max(jnp.abs(out - ref)))

    print("KERNEL_OK")
</pallas_src>

<mosaic_0001>
module attributes {stable_mosaic.version = 11 : i64} {
  func.func @_mlp_kernel(%arg0: i32, %arg1: memref<128x7xf32, #tpu.memory_space<vmem>>, %arg2: memref<128x8xf32, #tpu.memory_space<vmem>>, %arg3: memref<128x8xf32, #tpu.memory_space<vmem>>, %arg4: memref<8x128xf32, #tpu.memory_space<vmem>>, %arg5: memref<8x128xf32, #tpu.memory_space<vmem>>, %arg6: memref<1x128xf32, #tpu.memory_space<vmem>>, %arg7: memref<2x128x128xf32, #tpu.memory_space<vmem>>, %arg8: memref<2x1x128xf32, #tpu.memory_space<vmem>>, %arg9: memref<2x1x128xf32, #tpu.memory_space<vmem>>, %arg10: memref<2x128x128xf32, #tpu.memory_space<vmem>>, %arg11: memref<2x1x128xf32, #tpu.memory_space<vmem>>, %arg12: memref<2x1x128xf32, #tpu.memory_space<vmem>>, %arg13: memref<128x7xf32, #tpu.memory_space<vmem>>, %arg14: memref<1x7xf32, #tpu.memory_space<vmem>>, %arg15: memref<128x7xf32, #tpu.memory_space<vmem>>) attributes {dimension_semantics = [#tpu.dimension_semantics<parallel>], iteration_bounds = array<i64: 2>, scalar_prefetch = 0 : i64, scratch_operands = 0 : i64, tpu.core_type = #tpu.core_type<tc>, window_params = [{transform_indices = @transform_0, window_bounds = array<i64: 128, 7>}, {transform_indices = @transform_1, window_bounds = array<i64: 128, 8>}, {transform_indices = @transform_2, window_bounds = array<i64: 128, 8>}, {pipeline_mode = #tpu.pipeline_mode<synchronous>, transform_indices = @transform_3, window_bounds = array<i64: 8, 128>}, {pipeline_mode = #tpu.pipeline_mode<synchronous>, transform_indices = @transform_4, window_bounds = array<i64: 8, 128>}, {pipeline_mode = #tpu.pipeline_mode<synchronous>, transform_indices = @transform_5, window_bounds = array<i64: 1, 128>}, {pipeline_mode = #tpu.pipeline_mode<synchronous>, transform_indices = @transform_6, window_bounds = array<i64: 2, 128, 128>}, {pipeline_mode = #tpu.pipeline_mode<synchronous>, transform_indices = @transform_7, window_bounds = array<i64: 2, 1, 128>}, {pipeline_mode = #tpu.pipeline_mode<synchronous>, transform_indices = @transform_8, window_bounds = array<i64: 2, 1, 128>}, {pipeline_mode = #tpu.pipeline_mode<synchronous>, transform_indices = @transform_9, window_bounds = array<i64: 2, 128, 128>}, {pipeline_mode = #tpu.pipeline_mode<synchronous>, transform_indices = @transform_10, window_bounds = array<i64: 2, 1, 128>}, {pipeline_mode = #tpu.pipeline_mode<synchronous>, transform_indices = @transform_11, window_bounds = array<i64: 2, 1, 128>}, {pipeline_mode = #tpu.pipeline_mode<synchronous>, transform_indices = @transform_12, window_bounds = array<i64: 128, 7>}, {pipeline_mode = #tpu.pipeline_mode<synchronous>, transform_indices = @transform_13, window_bounds = array<i64: 1, 7>}, {transform_indices = @transform_14, window_bounds = array<i64: 128, 7>}]} {
    %c0 = arith.constant 0 : index
    %c0_0 = arith.constant 0 : index
    %0 = vector.load %arg2[%c0, %c0_0] : memref<128x8xf32, #tpu.memory_space<vmem>>, vector<128x8xf32>
    %c0_1 = arith.constant 0 : index
    %c0_2 = arith.constant 0 : index
    %1 = vector.load %arg4[%c0_1, %c0_2] : memref<8x128xf32, #tpu.memory_space<vmem>>, vector<8x128xf32>
    %cst = arith.constant dense<0.000000e+00> : vector<128x128xf32>
    %2 = tpu.matmul %0, %1, %cst {dimension_numbers = #tpu.dot_dimension_numbers<[1], [0], [0], [1], [0, 0, 1, 1], [], []>} : vector<128x8xf32>, vector<8x128xf32>, vector<128x128xf32> -> vector<128x128xf32>
    %c0_3 = arith.constant 0 : index
    %c0_4 = arith.constant 0 : index
    %3 = vector.load %arg3[%c0_3, %c0_4] : memref<128x8xf32, #tpu.memory_space<vmem>>, vector<128x8xf32>
    %c0_5 = arith.constant 0 : index
    %c0_6 = arith.constant 0 : index
    %4 = vector.load %arg5[%c0_5, %c0_6] : memref<8x128xf32, #tpu.memory_space<vmem>>, vector<8x128xf32>
    %cst_7 = arith.constant dense<0.000000e+00> : vector<128x128xf32>
    %5 = tpu.matmul %3, %4, %cst_7 {dimension_numbers = #tpu.dot_dimension_numbers<[1], [0], [0], [1], [0, 0, 1, 1], [], []>} : vector<128x8xf32>, vector<8x128xf32>, vector<128x128xf32> -> vector<128x128xf32>
    %6 = arith.addf %2, %5 : vector<128x128xf32>
    %c0_8 = arith.constant 0 : index
    %c0_9 = arith.constant 0 : index
    %7 = vector.load %arg6[%c0_8, %c0_9] : memref<1x128xf32, #tpu.memory_space<vmem>>, vector<1x128xf32>
    %8 = vector.broadcast %7 : vector<1x128xf32> to vector<128x128xf32>
    %9 = arith.addf %6, %8 : vector<128x128xf32>
    %c0_10 = arith.constant 0 : index
    %c0_11 = arith.constant 0 : index
    %c0_12 = arith.constant 0 : index
    %10 = vector.load %arg7[%c0_10, %c0_11, %c0_12] : memref<2x128x128xf32, #tpu.memory_space<vmem>>, vector<1x128x128xf32>
    %11 = vector.shape_cast %10 : vector<1x128x128xf32> to vector<128x128xf32>
    %cst_13 = arith.constant dense<0.000000e+00> : vector<128x128xf32>
    %12 = tpu.matmul %9, %11, %cst_13 {dimension_numbers = #tpu.dot_dimension_numbers<[1], [0], [0], [1], [0, 0, 1, 1], [], []>} : vector<128x128xf32>, vector<128x128xf32>, vector<128x128xf32> -> vector<128x128xf32>
    %c0_14 = arith.constant 0 : index
    %c0_15 = arith.constant 0 : index
    %c0_16 = arith.constant 0 : index
    %13 = vector.load %arg8[%c0_14, %c0_15, %c0_16] : memref<2x1x128xf32, #tpu.memory_space<vmem>>, vector<1x1x128xf32>
    %14 = vector.shape_cast %13 : vector<1x1x128xf32> to vector<1x128xf32>
    %15 = vector.broadcast %14 : vector<1x128xf32> to vector<128x128xf32>
    %16 = arith.mulf %12, %15 : vector<128x128xf32>
    %c0_17 = arith.constant 0 : index
    %c0_18 = arith.constant 0 : index
    %c0_19 = arith.constant 0 : index
    %17 = vector.load %arg9[%c0_17, %c0_18, %c0_19] : memref<2x1x128xf32, #tpu.memory_space<vmem>>, vector<1x1x128xf32>
    %18 = vector.shape_cast %17 : vector<1x1x128xf32> to vector<1x128xf32>
    %19 = vector.broadcast %18 : vector<1x128xf32> to vector<128x128xf32>
    %20 = arith.addf %16, %19 : vector<128x128xf32>
    %cst_20 = arith.constant 5.000000e-01 : f32
    %21 = vector.broadcast %cst_20 : f32 to vector<128x128xf32>
    %22 = arith.mulf %21, %20 : vector<128x128xf32>
    %23 = arith.mulf %20, %20 : vector<128x128xf32>
    %24 = arith.mulf %23, %20 : vector<128x128xf32>
    %cst_21 = arith.constant 4.471500e-02 : f32
    %25 = vector.broadcast %cst_21 : f32 to vector<128x128xf32>
    %26 = arith.mulf %25, %24 : vector<128x128xf32>
    %27 = arith.addf %20, %26 : vector<128x128xf32>
    %cst_22 = arith.constant 0.797884583 : f32
    %28 = vector.broadcast %cst_22 : f32 to vector<128x128xf32>
    %29 = arith.mulf %28, %27 : vector<128x128xf32>
    %30 = math.tanh %29 : vector<128x128xf32>
    %cst_23 = arith.constant 1.000000e+00 : f32
    %31 = vector.broadcast %cst_23 : f32 to vector<128x128xf32>
    %32 = arith.addf %31, %30 : vector<128x128xf32>
    %33 = arith.mulf %22, %32 : vector<128x128xf32>
    %c0_24 = arith.constant 0 : index
    %c0_25 = arith.constant 0 : index
    %c0_26 = arith.constant 0 : index
    %34 = vector.load %arg10[%c0_24, %c0_25, %c0_26] : memref<2x128x128xf32, #tpu.memory_space<vmem>>, vector<1x128x128xf32>
    %35 = vector.shape_cast %34 : vector<1x128x128xf32> to vector<128x128xf32>
    %cst_27 = arith.constant dense<0.000000e+00> : vector<128x128xf32>
    %36 = tpu.matmul %33, %35, %cst_27 {dimension_numbers = #tpu.dot_dimension_numbers<[1], [0], [0], [1], [0, 0, 1, 1], [], []>} : vector<128x128xf32>, vector<128x128xf32>, vector<128x128xf32> -> vector<128x128xf32>
    %c0_28 = arith.constant 0 : index
    %c0_29 = arith.constant 0 : index
    %c0_30 = arith.constant 0 : index
    %37 = vector.load %arg11[%c0_28, %c0_29, %c0_30] : memref<2x1x128xf32, #tpu.memory_space<vmem>>, vector<1x1x128xf32>
    %38 = vector.shape_cast %37 : vector<1x1x128xf32> to vector<1x128xf32>
    %39 = vector.broadcast %38 : vector<1x128xf32> to vector<128x128xf32>
    %40 = arith.mulf %36, %39 : vector<128x128xf32>
    %c0_31 = arith.constant 0 : index
    %c0_32 = arith.constant 0 : index
    %c0_33 = arith.constant 0 : index
    %41 = vector.load %arg12[%c0_31, %c0_32, %c0_33] : memref<2x1x128xf32, #tpu.memory_space<vmem>>, vector<1x1x128xf32>
    %42 = vector.shape_cast %41 : vector<1x1x128xf32> to vector<1x128xf32>
    %43 = vector.broadcast %42 : vector<1x128xf32> to vector<128x128xf32>
    %44 = arith.addf %40, %43 : vector<128x128xf32>
    %45 = arith.addf %44, %9 : vector<128x128xf32>
    %cst_34 = arith.constant 5.000000e-01 : f32
    %46 = vector.broadcast %cst_34 : f32 to vector<128x128xf32>
    %47 = arith.mulf %46, %45 : vector<128x128xf32>
    %48 = arith.mulf %45, %45 : vector<128x128xf32>
    %49 = arith.mulf %48, %45 : vector<128x128xf32>
    %cst_35 = arith.constant 4.471500e-02 : f32
    %50 = vector.broadcast %cst_35 : f32 to vector<128x128xf32>
    %51 = arith.mulf %50, %49 : vector<128x128xf32>
    %52 = arith.addf %45, %51 : vector<128x128xf32>
    %cst_36 = arith.constant 0.797884583 : f32
    %53 = vector.broadcast %cst_36 : f32 to vector<128x128xf32>
    %54 = arith.mulf %53, %52 : vector<128x128xf32>
    %55 = math.tanh %54 : vector<128x128xf32>
    %cst_37 = arith.constant 1.000000e+00 : f32
    %56 = vector.broadcast %cst_37 : f32 to vector<128x128xf32>
    %57 = arith.addf %56, %55 : vector<128x128xf32>
    %58 = arith.mulf %47, %57 : vector<128x128xf32>
    %c1 = arith.constant 1 : index
    %c0_38 = arith.constant 0 : index
    %c0_39 = arith.constant 0 : index
    %59 = vector.load %arg7[%c1, %c0_38, %c0_39] : memref<2x128x128xf32, #tpu.memory_space<vmem>>, vector<1x128x128xf32>
    %60 = vector.shape_cast %59 : vector<1x128x128xf32> to vector<128x128xf32>
    %cst_40 = arith.constant dense<0.000000e+00> : vector<128x128xf32>
    %61 = tpu.matmul %58, %60, %cst_40 {dimension_numbers = #tpu.dot_dimension_numbers<[1], [0], [0], [1], [0, 0, 1, 1], [], []>} : vector<128x128xf32>, vector<128x128xf32>, vector<128x128xf32> -> vector<128x128xf32>
    %c1_41 = arith.constant 1 : index
    %c0_42 = arith.constant 0 : index
    %c0_43 = arith.constant 0 : index
    %62 = vector.load %arg8[%c1_41, %c0_42, %c0_43] : memref<2x1x128xf32, #tpu.memory_space<vmem>>, vector<1x1x128xf32>
    %63 = vector.shape_cast %62 : vector<1x1x128xf32> to vector<1x128xf32>
    %64 = vector.broadcast %63 : vector<1x128xf32> to vector<128x128xf32>
    %65 = arith.mulf %61, %64 : vector<128x128xf32>
    %c1_44 = arith.constant 1 : index
    %c0_45 = arith.constant 0 : index
    %c0_46 = arith.constant 0 : index
    %66 = vector.load %arg9[%c1_44, %c0_45, %c0_46] : memref<2x1x128xf32, #tpu.memory_space<vmem>>, vector<1x1x128xf32>
    %67 = vector.shape_cast %66 : vector<1x1x128xf32> to vector<1x128xf32>
    %68 = vector.broadcast %67 : vector<1x128xf32> to vector<128x128xf32>
    %69 = arith.addf %65, %68 : vector<128x128xf32>
    %cst_47 = arith.constant 5.000000e-01 : f32
    %70 = vector.broadcast %cst_47 : f32 to vector<128x128xf32>
    %71 = arith.mulf %70, %69 : vector<128x128xf32>
    %72 = arith.mulf %69, %69 : vector<128x128xf32>
    %73 = arith.mulf %72, %69 : vector<128x128xf32>
    %cst_48 = arith.constant 4.471500e-02 : f32
    %74 = vector.broadcast %cst_48 : f32 to vector<128x128xf32>
    %75 = arith.mulf %74, %73 : vector<128x128xf32>
    %76 = arith.addf %69, %75 : vector<128x128xf32>
    %cst_49 = arith.constant 0.797884583 : f32
    %77 = vector.broadcast %cst_49 : f32 to vector<128x128xf32>
    %78 = arith.mulf %77, %76 : vector<128x128xf32>
    %79 = math.tanh %78 : vector<128x128xf32>
    %cst_50 = arith.constant 1.000000e+00 : f32
    %80 = vector.broadcast %cst_50 : f32 to vector<128x128xf32>
    %81 = arith.addf %80, %79 : vector<128x128xf32>
    %82 = arith.mulf %71, %81 : vector<128x128xf32>
    %c1_51 = arith.constant 1 : index
    %c0_52 = arith.constant 0 : index
    %c0_53 = arith.constant 0 : index
    %83 = vector.load %arg10[%c1_51, %c0_52, %c0_53] : memref<2x128x128xf32, #tpu.memory_space<vmem>>, vector<1x128x128xf32>
    %84 = vector.shape_cast %83 : vector<1x128x128xf32> to vector<128x128xf32>
    %cst_54 = arith.constant dense<0.000000e+00> : vector<128x128xf32>
    %85 = tpu.matmul %82, %84, %cst_54 {dimension_numbers = #tpu.dot_dimension_numbers<[1], [0], [0], [1], [0, 0, 1, 1], [], []>} : vector<128x128xf32>, vector<128x128xf32>, vector<128x128xf32> -> vector<128x128xf32>
    %c1_55 = arith.constant 1 : index
    %c0_56 = arith.constant 0 : index
    %c0_57 = arith.constant 0 : index
    %86 = vector.load %arg11[%c1_55, %c0_56, %c0_57] : memref<2x1x128xf32, #tpu.memory_space<vmem>>, vector<1x1x128xf32>
    %87 = vector.shape_cast %86 : vector<1x1x128xf32> to vector<1x128xf32>
    %88 = vector.broadcast %87 : vector<1x128xf32> to vector<128x128xf32>
    %89 = arith.mulf %85, %88 : vector<128x128xf32>
    %c1_58 = arith.constant 1 : index
    %c0_59 = arith.constant 0 : index
    %c0_60 = arith.constant 0 : index
    %90 = vector.load %arg12[%c1_58, %c0_59, %c0_60] : memref<2x1x128xf32, #tpu.memory_space<vmem>>, vector<1x1x128xf32>
    %91 = vector.shape_cast %90 : vector<1x1x128xf32> to vector<1x128xf32>
    %92 = vector.broadcast %91 : vector<1x128xf32> to vector<128x128xf32>
    %93 = arith.addf %89, %92 : vector<128x128xf32>
    %94 = arith.addf %93, %58 : vector<128x128xf32>
    %cst_61 = arith.constant 5.000000e-01 : f32
    %95 = vector.broadcast %cst_61 : f32 to vector<128x128xf32>
    %96 = arith.mulf %95, %94 : vector<128x128xf32>
    %97 = arith.mulf %94, %94 : vector<128x128xf32>
    %98 = arith.mulf %97, %94 : vector<128x128xf32>
    %cst_62 = arith.constant 4.471500e-02 : f32
    %99 = vector.broadcast %cst_62 : f32 to vector<128x128xf32>
    %100 = arith.mulf %99, %98 : vector<128x128xf32>
    %101 = arith.addf %94, %100 : vector<128x128xf32>
    %cst_63 = arith.constant 0.797884583 : f32
    %102 = vector.broadcast %cst_63 : f32 to vector<128x128xf32>
    %103 = arith.mulf %102, %101 : vector<128x128xf32>
    %104 = math.tanh %103 : vector<128x128xf32>
    %cst_64 = arith.constant 1.000000e+00 : f32
    %105 = vector.broadcast %cst_64 : f32 to vector<128x128xf32>
    %106 = arith.addf %105, %104 : vector<128x128xf32>
    %107 = arith.mulf %96, %106 : vector<128x128xf32>
    %c0_65 = arith.constant 0 : index
    %c0_66 = arith.constant 0 : index
    %108 = vector.load %arg13[%c0_65, %c0_66] : memref<128x7xf32, #tpu.memory_space<vmem>>, vector<128x7xf32>
    %cst_67 = arith.constant dense<0.000000e+00> : vector<128x7xf32>
    %109 = tpu.matmul %107, %108, %cst_67 {dimension_numbers = #tpu.dot_dimension_numbers<[1], [0], [0], [1], [0, 0, 1, 1], [], []>} : vector<128x128xf32>, vector<128x7xf32>, vector<128x7xf32> -> vector<128x7xf32>
    %c0_68 = arith.constant 0 : index
    %c0_69 = arith.constant 0 : index
    %110 = vector.load %arg14[%c0_68, %c0_69] : memref<1x7xf32, #tpu.memory_space<vmem>>, vector<1x7xf32>
    %111 = vector.broadcast %110 : vector<1x7xf32> to vector<128x7xf32>
    %112 = arith.addf %109, %111 : vector<128x7xf32>
    %c0_70 = arith.constant 0 : index
    %c0_71 = arith.constant 0 : index
    %113 = vector.load %arg1[%c0_70, %c0_71] : memref<128x7xf32, #tpu.memory_space<vmem>>, vector<128x7xf32>
    %114 = arith.addf %112, %113 : vector<128x7xf32>
    %c0_72 = arith.constant 0 : index
    %c0_73 = arith.constant 0 : index
    %115 = vector.load %arg15[%c0_72, %c0_73] : memref<128x7xf32, #tpu.memory_space<vmem>>, vector<128x7xf32>
    tpu.vector_store %arg15[%c0_72, %c0_73], %114 {strides = array<i32>} : memref<128x7xf32, #tpu.memory_space<vmem>>, vector<128x7xf32>,
    return
  }
  func.func @transform_0(%arg0: i32) -> (i32, i32) {
    %c0_i32 = arith.constant 0 : i32
    %c0_i32_0 = arith.constant 0 : i32
    return %arg0, %c0_i32 : i32, i32
  }
  func.func @transform_1(%arg0: i32) -> (i32, i32) {
    %c0_i32 = arith.constant 0 : i32
    %c0_i32_0 = arith.constant 0 : i32
    return %arg0, %c0_i32 : i32, i32
  }
  func.func @transform_2(%arg0: i32) -> (i32, i32) {
    %c0_i32 = arith.constant 0 : i32
    %c0_i32_0 = arith.constant 0 : i32
    return %arg0, %c0_i32 : i32, i32
  }
  func.func @transform_3(%arg0: i32) -> (i32, i32) {
    %c0_i32 = arith.constant 0 : i32
    %c0_i32_0 = arith.constant 0 : i32
    %c0_i32_1 = arith.constant 0 : i32
    return %c0_i32, %c0_i32_0 : i32, i32
  }
  func.func @transform_4(%arg0: i32) -> (i32, i32) {
    %c0_i32 = arith.constant 0 : i32
    %c0_i32_0 = arith.constant 0 : i32
    %c0_i32_1 = arith.constant 0 : i32
    return %c0_i32, %c0_i32_0 : i32, i32
  }
  func.func @transform_5(%arg0: i32) -> (i32, i32) {
    %c0_i32 = arith.constant 0 : i32
    %c0_i32_0 = arith.constant 0 : i32
    %c0_i32_1 = arith.constant 0 : i32
    return %c0_i32, %c0_i32_0 : i32, i32
  }
  func.func @transform_6(%arg0: i32) -> (i32, i32, i32) {
    %c0_i32 = arith.constant 0 : i32
    %c0_i32_0 = arith.constant 0 : i32
    %c0_i32_1 = arith.constant 0 : i32
    %c0_i32_2 = arith.constant 0 : i32
    return %c0_i32, %c0_i32_0, %c0_i32_1 : i32, i32, i32
  }
  func.func @transform_7(%arg0: i32) -> (i32, i32, i32) {
    %c0_i32 = arith.constant 0 : i32
    %c0_i32_0 = arith.constant 0 : i32
    %c0_i32_1 = arith.constant 0 : i32
    %c0_i32_2 = arith.constant 0 : i32
    return %c0_i32, %c0_i32_0, %c0_i32_1 : i32, i32, i32
  }
  func.func @transform_8(%arg0: i32) -> (i32, i32, i32) {
    %c0_i32 = arith.constant 0 : i32
    %c0_i32_0 = arith.constant 0 : i32
    %c0_i32_1 = arith.constant 0 : i32
    %c0_i32_2 = arith.constant 0 : i32
    return %c0_i32, %c0_i32_0, %c0_i32_1 : i32, i32, i32
  }
  func.func @transform_9(%arg0: i32) -> (i32, i32, i32) {
    %c0_i32 = arith.constant 0 : i32
    %c0_i32_0 = arith.constant 0 : i32
    %c0_i32_1 = arith.constant 0 : i32
    %c0_i32_2 = arith.constant 0 : i32
    return %c0_i32, %c0_i32_0, %c0_i32_1 : i32, i32, i32
  }
  func.func @transform_10(%arg0: i32) -> (i32, i32, i32) {
    %c0_i32 = arith.constant 0 : i32
    %c0_i32_0 = arith.constant 0 : i32
    %c0_i32_1 = arith.constant 0 : i32
    %c0_i32_2 = arith.constant 0 : i32
    return %c0_i32, %c0_i32_0, %c0_i32_1 : i32, i32, i32
  }
  func.func @transform_11(%arg0: i32) -> (i32, i32, i32) {
    %c0_i32 = arith.constant 0 : i32
    %c0_i32_0 = arith.constant 0 : i32
    %c0_i32_1 = arith.constant 0 : i32
    %c0_i32_2 = arith.constant 0 : i32
    return %c0_i32, %c0_i32_0, %c0_i32_1 : i32, i32, i32
  }
  func.func @transform_12(%arg0: i32) -> (i32, i32) {
    %c0_i32 = arith.constant 0 : i32
    %c0_i32_0 = arith.constant 0 : i32
    %c0_i32_1 = arith.constant 0 : i32
    return %c0_i32, %c0_i32_0 : i32, i32
  }
  func.func @transform_13(%arg0: i32) -> (i32, i32) {
    %c0_i32 = arith.constant 0 : i32
    %c0_i32_0 = arith.constant 0 : i32
    %c0_i32_1 = arith.constant 0 : i32
    return %c0_i32, %c0_i32_0 : i32, i32
  }
  func.func @transform_14(%arg0: i32) -> (i32, i32) {
    %c0_i32 = arith.constant 0 : i32
    %c0_i32_0 = arith.constant 0 : i32
    return %arg0, %c0_i32 : i32, i32
  }
}

</mosaic_0001>

<llo_original>
// kernel: tpu_custom_call.1
$region0: #{tpu_custom_call.1}
  #allocation0 [shape = 'u32[]', space=smem, size = 0x4, offset = 0x4, fixed_abs, tag = 'smem constant byte address 0x4 - core index']
  #allocation1 [shape = 'u32[144,128]{1,0:T(1,128)}', space=vmem, size = 0x12000, scoped, tag = 'internal scratch']
  %s0 = inlined_call_operand.vmem [shape: f32[256,7], index: 0, kind: input, shape index: {}]
  %s1 = inlined_call_operand.vmem [shape: f32[256,8], index: 1, kind: input, shape index: {}]
  %s2 = inlined_call_operand.vmem [shape: f32[256,8], index: 2, kind: input, shape index: {}]
  %s3 = inlined_call_operand.vmem [shape: f32[8,128], index: 3, kind: input, shape index: {}]
  %s4 = inlined_call_operand.vmem [shape: f32[8,128], index: 4, kind: input, shape index: {}]
  %s5 = inlined_call_operand.vmem [shape: f32[1,128], index: 5, kind: input, shape index: {}]
  %s6 = inlined_call_operand.vmem [shape: f32[2,128,128], index: 6, kind: input, shape index: {}]
  %s7 = inlined_call_operand.vmem [shape: f32[2,1,128], index: 7, kind: input, shape index: {}]
  %s8 = inlined_call_operand.vmem [shape: f32[2,1,128], index: 8, kind: input, shape index: {}]
  %s9 = inlined_call_operand.vmem [shape: f32[2,128,128], index: 9, kind: input, shape index: {}]
  %s10 = inlined_call_operand.vmem [shape: f32[2,1,128], index: 10, kind: input, shape index: {}]
  %s11 = inlined_call_operand.vmem [shape: f32[2,1,128], index: 11, kind: input, shape index: {}]
  %s12 = inlined_call_operand.vmem [shape: f32[128,7], index: 12, kind: input, shape index: {}]
  %s13 = inlined_call_operand.vmem [shape: f32[1,7], index: 13, kind: input, shape index: {}]
  %s14 = inlined_call_operand.vmem [shape: f32[256,7], index: 14, kind: output, shape index: {}]
  %s15 = sld [smem:[#allocation0]]
  $region89: #{tpu_custom_call.1} parent=0
    _
  %s17 = ssub.s32 1, %s15
  %s18 = scalar_select 0, %s17, %s15
  loop: start=0, step=1, limit=4
  $region2: #{tpu_custom_call.1} parent=0 // loop_pre_header
    _
  $region3: #{tpu_custom_call.1} parent=0 // loop_header
    %s20 = sphi 0, %s24
    %p21 = scmp.ge.s32.totalorder %s20, 4
    %s30 = sphi 0, %s32
    %s33 = sphi 0, %s30
    %s34 = sphi 0, %s33
    %s50 = sphi 0, %s34
    %s56 = sphi 0, %s58
    %s59 = sphi 0, %s56
    %s60 = sphi 0, %s59
    %s76 = sphi 0, %s60
    %s82 = sphi 0, %s84
    %s85 = sphi 0, %s82
    %s86 = sphi 0, %s85
    %s102 = sphi 0, %s86
    %s106 = sphi 0, %s106
    %s108 = sphi 0, %s106
    %s109 = sphi 0, %s108
    %s123 = sphi 0, %s109
    %s127 = sphi 0, %s127
    %s129 = sphi 0, %s127
    %s130 = sphi 0, %s129
    %s144 = sphi 0, %s130
    %s148 = sphi 0, %s148
    %s150 = sphi 0, %s148
    %s151 = sphi 0, %s150
    %s165 = sphi 0, %s151
    %s169 = sphi 0, %s169
    %s171 = sphi 0, %s169
    %s172 = sphi 0, %s171
    %s186 = sphi 0, %s172
    %s190 = sphi 0, %s190
    %s192 = sphi 0, %s190
    %s193 = sphi 0, %s192
    %s207 = sphi 0, %s193
    %s211 = sphi 0, %s211
    %s213 = sphi 0, %s211
    %s214 = sphi 0, %s213
    %s228 = sphi 0, %s214
    %s232 = sphi 0, %s232
    %s234 = sphi 0, %s232
    %s235 = sphi 0, %s234
    %s249 = sphi 0, %s235
    %s253 = sphi 0, %s253
    %s255 = sphi 0, %s253
    %s256 = sphi 0, %s255
    %s270 = sphi 0, %s256
    %s274 = sphi 0, %s274
    %s276 = sphi 0, %s274
    %s277 = sphi 0, %s276
    %s291 = sphi 0, %s277
    %s295 = sphi 0, %s295
    %s297 = sphi 0, %s295
    %s298 = sphi 0, %s297
    %s312 = sphi 0, %s298
    %s316 = sphi 0, %s316
    %s318 = sphi 0, %s316
    %s319 = sphi 0, %s318
    %s333 = sphi 0, %s319
    %s339 = sphi 0, %s341
    %s342 = sphi 0, %s339
    %s343 = sphi 0, %s342
    %s359 = sphi 0, %s343
  $region4: #{tpu_custom_call.1} parent=0 // loop_header_branch
    %23 = sbr.rel (%p21) target = $region8
  $region5: #{tpu_custom_call.1} parent=0 // loop_body
    %s25 = ssub.s32 %s20, 1
    %s26 = ssub.s32 %s20, 2
    %s27 = sadd.s32 %s20, 1
    %s28 = ssub.s32 %s20, %s27
    %p29 = scmp.eq.s32.totalorder %s28, 0
    %s31 = sadd.s32 %s30, 1
    %s32 = scalar_select %p29, %s30, %s31
    %p35 = pneg %p29
    %p36 = scmp.eq.s32.totalorder %s20, 1
    %p37 = por %p35, %p36
    %p38 = scmp.ne.s32.totalorder %s30, %s33
    %p39 = scmp.eq.s32.totalorder %s20, 0
    %p40 = por %p38, %p39
    %p41 = scmp.ne.s32.totalorder %s30, %s33
    %p42 = scmp.eq.s32.totalorder %s25, 1
    %p43 = por %p41, %p42
    %p44 = scmp.ne.s32.totalorder %s33, %s34
    %p45 = scmp.eq.s32.totalorder %s25, 0
    %p46 = por %p44, %p45
    %p47 = scmp.ne.s32.totalorder %s33, %s34
    %p48 = scmp.eq.s32.totalorder %s26, 1
    %p49 = por %p47, %p48
    %p51 = scmp.ne.s32.totalorder %s34, %s50
    %p52 = scmp.eq.s32.totalorder %s26, 0
    %p53 = por %p51, %p52
    %s54 = ssub.s32 %s20, %s27
    %p55 = scmp.eq.s32.totalorder %s54, 0
    %s57 = sadd.s32 %s56, 1
    %s58 = scalar_select %p55, %s56, %s57
    %p61 = pneg %p55
    %p62 = scmp.eq.s32.totalorder %s20, 1
    %p63 = por %p61, %p62
    %p64 = scmp.ne.s32.totalorder %s56, %s59
    %p65 = scmp.eq.s32.totalorder %s20, 0
    %p66 = por %p64, %p65
    %p67 = scmp.ne.s32.totalorder %s56, %s59
    %p68 = scmp.eq.s32.totalorder %s25, 1
    %p69 = por %p67, %p68
    %p70 = scmp.ne.s32.totalorder %s59, %s60
    %p71 = scmp.eq.s32.totalorder %s25, 0
    %p72 = por %p70, %p71
    %p73 = scmp.ne.s32.totalorder %s59, %s60
    %p74 = scmp.eq.s32.totalorder %s26, 1
    %p75 = por %p73, %p74
    %p77 = scmp.ne.s32.totalorder %s60, %s76
    %p78 = scmp.eq.s32.totalorder %s26, 0
    %p79 = por %p77, %p78
    %s80 = ssub.s32 %s20, %s27
    %p81 = scmp.eq.s32.totalorder %s80, 0
    %s83 = sadd.s32 %s82, 1
    %s84 = scalar_select %p81, %s82, %s83
    %p87 = pneg %p81
    %p88 = scmp.eq.s32.totalorder %s20, 1
    %p89 = por %p87, %p88
    %p90 = scmp.ne.s32.totalorder %s82, %s85
    %p91 = scmp.eq.s32.totalorder %s20, 0
    %p92 = por %p90, %p91
    %p93 = scmp.ne.s32.totalorder %s82, %s85
    %p94 = scmp.eq.s32.totalorder %s25, 1
    %p95 = por %p93, %p94
    %p96 = scmp.ne.s32.totalorder %s85, %s86
    %p97 = scmp.eq.s32.totalorder %s25, 0
    %p98 = por %p96, %p97
    %p99 = scmp.ne.s32.totalorder %s85, %s86
    %p100 = scmp.eq.s32.totalorder %s26, 1
    %p101 = por %p99, %p100
    %p103 = scmp.ne.s32.totalorder %s86, %s102
    %p104 = scmp.eq.s32.totalorder %s26, 0
    %p105 = por %p103, %p104
    %s107 = sadd.s32 %s106, 1
    %p110 = scmp.eq.s32.totalorder %s20, 1
    %p111 = scmp.ne.s32.totalorder %s106, %s108
    %p112 = scmp.eq.s32.totalorder %s20, 0
    %p113 = por %p111, %p112
    %p114 = scmp.ne.s32.totalorder %s106, %s108
    %p115 = scmp.eq.s32.totalorder %s25, 1
    %p116 = por %p114, %p115
    %p117 = scmp.ne.s32.totalorder %s108, %s109
    %p118 = scmp.eq.s32.totalorder %s25, 0
    %p119 = por %p117, %p118
    %p120 = scmp.ne.s32.totalorder %s108, %s109
    %p121 = scmp.eq.s32.totalorder %s26, 1
    %p122 = por %p120, %p121
    %p124 = scmp.ne.s32.totalorder %s109, %s123
    %p125 = scmp.eq.s32.totalorder %s26, 0
    %p126 = por %p124, %p125
    %s128 = sadd.s32 %s127, 1
    %p131 = scmp.eq.s32.totalorder %s20, 1
    %p132 = scmp.ne.s32.totalorder %s127, %s129
    %p133 = scmp.eq.s32.totalorder %s20, 0
    %p134 = por %p132, %p133
    %p135 = scmp.ne.s32.totalorder %s127, %s129
    %p136 = scmp.eq.s32.totalorder %s25, 1
    %p137 = por %p135, %p136
    %p138 = scmp.ne.s32.totalorder %s129, %s130
    %p139 = scmp.eq.s32.totalorder %s25, 0
    %p140 = por %p138, %p139
    %p141 = scmp.ne.s32.totalorder %s129, %s130
    %p142 = scmp.eq.s32.totalorder %s26, 1
    %p143 = por %p141, %p142
    %p145 = scmp.ne.s32.totalorder %s130, %s144
    %p146 = scmp.eq.s32.totalorder %s26, 0
    %p147 = por %p145, %p146
    %s149 = sadd.s32 %s148, 1
    %p152 = scmp.eq.s32.totalorder %s20, 1
    %p153 = scmp.ne.s32.totalorder %s148, %s150
    %p154 = scmp.eq.s32.totalorder %s20, 0
    %p155 = por %p153, %p154
    %p156 = scmp.ne.s32.totalorder %s148, %s150
    %p157 = scmp.eq.s32.totalorder %s25, 1
    %p158 = por %p156, %p157
    %p159 = scmp.ne.s32.totalorder %s150, %s151
    %p160 = scmp.eq.s32.totalorder %s25, 0
    %p161 = por %p159, %p160
    %p162 = scmp.ne.s32.totalorder %s150, %s151
    %p163 = scmp.eq.s32.totalorder %s26, 1
    %p164 = por %p162, %p163
    %p166 = scmp.ne.s32.totalorder %s151, %s165
    %p167 = scmp.eq.s32.totalorder %s26, 0
    %p168 = por %p166, %p167
    %s170 = sadd.s32 %s169, 1
    %p173 = scmp.eq.s32.totalorder %s20, 1
    %p174 = scmp.ne.s32.totalorder %s169, %s171
    %p175 = scmp.eq.s32.totalorder %s20, 0
    %p176 = por %p174, %p175
    %p177 = scmp.ne.s32.totalorder %s169, %s171
    %p178 = scmp.eq.s32.totalorder %s25, 1
    %p179 = por %p177, %p178
    %p180 = scmp.ne.s32.totalorder %s171, %s172
    %p181 = scmp.eq.s32.totalorder %s25, 0
    %p182 = por %p180, %p181
    %p183 = scmp.ne.s32.totalorder %s171, %s172
    %p184 = scmp.eq.s32.totalorder %s26, 1
    %p185 = por %p183, %p184
    %p187 = scmp.ne.s32.totalorder %s172, %s186
    %p188 = scmp.eq.s32.totalorder %s26, 0
    %p189 = por %p187, %p188
    %s191 = sadd.s32 %s190, 1
    %p194 = scmp.eq.s32.totalorder %s20, 1
    %p195 = scmp.ne.s32.totalorder %s190, %s192
    %p196 = scmp.eq.s32.totalorder %s20, 0
    %p197 = por %p195, %p196
    %p198 = scmp.ne.s32.totalorder %s190, %s192
    %p199 = scmp.eq.s32.totalorder %s25, 1
    %p200 = por %p198, %p199
    %p201 = scmp.ne.s32.totalorder %s192, %s193
    %p202 = scmp.eq.s32.totalorder %s25, 0
    %p203 = por %p201, %p202
    %p204 = scmp.ne.s32.totalorder %s192, %s193
    %p205 = scmp.eq.s32.totalorder %s26, 1
    %p206 = por %p204, %p205
    %p208 = scmp.ne.s32.totalorder %s193, %s207
    %p209 = scmp.eq.s32.totalorder %s26, 0
    %p210 = por %p208, %p209
    %s212 = sadd.s32 %s211, 1
    %p215 = scmp.eq.s32.totalorder %s20, 1
    %p216 = scmp.ne.s32.totalorder %s211, %s213
    %p217 = scmp.eq.s32.totalorder %s20, 0
    %p218 = por %p216, %p217
    %p219 = scmp.ne.s32.totalorder %s211, %s213
    %p220 = scmp.eq.s32.totalorder %s25, 1
    %p221 = por %p219, %p220
    %p222 = scmp.ne.s32.totalorder %s213, %s214
    %p223 = scmp.eq.s32.totalorder %s25, 0
    %p224 = por %p222, %p223
    %p225 = scmp.ne.s32.totalorder %s213, %s214
    %p226 = scmp.eq.s32.totalorder %s26, 1
    %p227 = por %p225, %p226
    %p229 = scmp.ne.s32.totalorder %s214, %s228
    %p230 = scmp.eq.s32.totalorder %s26, 0
    %p231 = por %p229, %p230
    %s233 = sadd.s32 %s232, 1
    %p236 = scmp.eq.s32.totalorder %s20, 1
    %p237 = scmp.ne.s32.totalorder %s232, %s234
    %p238 = scmp.eq.s32.totalorder %s20, 0
    %p239 = por %p237, %p238
    %p240 = scmp.ne.s32.totalorder %s232, %s234
    %p241 = scmp.eq.s32.totalorder %s25, 1
    %p242 = por %p240, %p241
    %p243 = scmp.ne.s32.totalorder %s234, %s235
    %p244 = scmp.eq.s32.totalorder %s25, 0
    %p245 = por %p243, %p244
    %p246 = scmp.ne.s32.totalorder %s234, %s235
    %p247 = scmp.eq.s32.totalorder %s26, 1
    %p248 = por %p246, %p247
    %p250 = scmp.ne.s32.totalorder %s235, %s249
    %p251 = scmp.eq.s32.totalorder %s26, 0
    %p252 = por %p250, %p251
    %s254 = sadd.s32 %s253, 1
    %p257 = scmp.eq.s32.totalorder %s20, 1
    %p258 = scmp.ne.s32.totalorder %s253, %s255
    %p259 = scmp.eq.s32.totalorder %s20, 0
    %p260 = por %p258, %p259
    %p261 = scmp.ne.s32.totalorder %s253, %s255
    %p262 = scmp.eq.s32.totalorder %s25, 1
    %p263 = por %p261, %p262
    %p264 = scmp.ne.s32.totalorder %s255, %s256
    %p265 = scmp.eq.s32.totalorder %s25, 0
    %p266 = por %p264, %p265
    %p267 = scmp.ne.s32.totalorder %s255, %s256
    %p268 = scmp.eq.s32.totalorder %s26, 1
    %p269 = por %p267, %p268
    %p271 = scmp.ne.s32.totalorder %s256, %s270
    %p272 = scmp.eq.s32.totalorder %s26, 0
    %p273 = por %p271, %p272
    %s275 = sadd.s32 %s274, 1
    %p278 = scmp.eq.s32.totalorder %s20, 1
    %p279 = scmp.ne.s32.totalorder %s274, %s276
    %p280 = scmp.eq.s32.totalorder %s20, 0
    %p281 = por %p279, %p280
    %p282 = scmp.ne.s32.totalorder %s274, %s276
    %p283 = scmp.eq.s32.totalorder %s25, 1
    %p284 = por %p282, %p283
    %p285 = scmp.ne.s32.totalorder %s276, %s277
    %p286 = scmp.eq.s32.totalorder %s25, 0
    %p287 = por %p285, %p286
    %p288 = scmp.ne.s32.totalorder %s276, %s277
    %p289 = scmp.eq.s32.totalorder %s26, 1
    %p290 = por %p288, %p289
    %p292 = scmp.ne.s32.totalorder %s277, %s291
    %p293 = scmp.eq.s32.totalorder %s26, 0
    %p294 = por %p292, %p293
    %s296 = sadd.s32 %s295, 1
    %p299 = scmp.eq.s32.totalorder %s20, 1
    %p300 = scmp.ne.s32.totalorder %s295, %s297
    %p301 = scmp.eq.s32.totalorder %s20, 0
    %p302 = por %p300, %p301
    %p303 = scmp.ne.s32.totalorder %s295, %s297
    %p304 = scmp.eq.s32.totalorder %s25, 1
    %p305 = por %p303, %p304
    %p306 = scmp.ne.s32.totalorder %s297, %s298
    %p307 = scmp.eq.s32.totalorder %s25, 0
    %p308 = por %p306, %p307
    %p309 = scmp.ne.s32.totalorder %s297, %s298
    %p310 = scmp.eq.s32.totalorder %s26, 1
    %p311 = por %p309, %p310
    %p313 = scmp.ne.s32.totalorder %s298, %s312
    %p314 = scmp.eq.s32.totalorder %s26, 0
    %p315 = por %p313, %p314
    %s317 = sadd.s32 %s316, 1
    %p320 = scmp.eq.s32.totalorder %s20, 1
    %p321 = scmp.ne.s32.totalorder %s316, %s318
    %p322 = scmp.eq.s32.totalorder %s20, 0
    %p323 = por %p321, %p322
    %p324 = scmp.ne.s32.totalorder %s316, %s318
    %p325 = scmp.eq.s32.totalorder %s25, 1
    %p326 = por %p324, %p325
    %p327 = scmp.ne.s32.totalorder %s318, %s319
    %p328 = scmp.eq.s32.totalorder %s25, 0
    %p329 = por %p327, %p328
    %p330 = scmp.ne.s32.totalorder %s318, %s319
    %p331 = scmp.eq.s32.totalorder %s26, 1
    %p332 = por %p330, %p331
    %p334 = scmp.ne.s32.totalorder %s319, %s333
    %p335 = scmp.eq.s32.totalorder %s26, 0
    %p336 = por %p334, %p335
    %s337 = ssub.s32 %s20, %s27
    %p338 = scmp.eq.s32.totalorder %s337, 0
    %s340 = sadd.s32 %s339, 1
    %s341 = scalar_select %p338, %s339, %s340
    %p344 = pneg %p338
    %p345 = scmp.eq.s32.totalorder %s20, 1
    %p346 = por %p344, %p345
    %p347 = scmp.ne.s32.totalorder %s339, %s342
    %p348 = scmp.eq.s32.totalorder %s20, 0
    %p349 = por %p347, %p348
    %p350 = scmp.ne.s32.totalorder %s339, %s342
    %p351 = scmp.eq.s32.totalorder %s25, 1
    %p352 = por %p350, %p351
    %p353 = scmp.ne.s32.totalorder %s342, %s343
    %p354 = scmp.eq.s32.totalorder %s25, 0
    %p355 = por %p353, %p354
    %p356 = scmp.ne.s32.totalorder %s342, %s343
    %p357 = scmp.eq.s32.totalorder %s26, 1
    %p358 = por %p356, %p357
    %p360 = scmp.ne.s32.totalorder %s343, %s359
    %p361 = scmp.eq.s32.totalorder %s26, 0
    %p362 = por %p360, %p361
    %p363 = scmp.le.s32.totalorder 1, %s20
    %p364 = scmp.lt.s32.totalorder %s20, 3
    %p365 = pnand %p363, %p364
    %p366 = pneg %p365
    // Predicated region
    $region9: #{tpu_custom_call.1} parent=5 // pred_check
      _
    $region10: #{tpu_custom_call.1} parent=5 // pred_check_branch
      %368 = sbr.rel (%p365) target = $region12
    $region11: #{tpu_custom_call.1} parent=5 // pred_region
      %s369 = ssub.s32 %s20, 1
      // Predicated region
      $region13: #{tpu_custom_call.1} parent=11 // pred_check
        %p370 = pneg %p119
      $region14: #{tpu_custom_call.1} parent=11 // pred_check_branch
        %372 = sbr.rel (%p370) target = $region16
      $region15: #{tpu_custom_call.1} parent=11 // pred_region
        _
      $region16: #{tpu_custom_call.1} parent=11 // pred_fallthru
        _
      // Predicated region
      $region17: #{tpu_custom_call.1} parent=11 // pred_check
        %p373 = pneg %p140
      $region18: #{tpu_custom_call.1} parent=11 // pred_check_branch
        %375 = sbr.rel (%p373) target = $region20
      $region19: #{tpu_custom_call.1} parent=11 // pred_region
        _
      $region20: #{tpu_custom_call.1} parent=11 // pred_fallthru
        _
      // Predicated region
      $region21: #{tpu_custom_call.1} parent=11 // pred_check
        %p376 = pneg %p161
      $region22: #{tpu_custom_call.1} parent=11 // pred_check_branch
        %378 = sbr.rel (%p376) target = $region24
      $region23: #{tpu_custom_call.1} parent=11 // pred_region
        _
      $region24: #{tpu_custom_call.1} parent=11 // pred_fallthru
        _
      // Predicated region
      $region25: #{tpu_custom_call.1} parent=11 // pred_check
        %p379 = pneg %p182
      $region26: #{tpu_custom_call.1} parent=11 // pred_check_branch
        %381 = sbr.rel (%p379) target = $region28
      $region27: #{tpu_custom_call.1} parent=11 // pred_region
        _
      $region28: #{tpu_custom_call.1} parent=11 // pred_fallthru
        _
      // Predicated region
      $region29: #{tpu_custom_call.1} parent=11 // pred_check
        %p382 = pneg %p203
      $region30: #{tpu_custom_call.1} parent=11 // pred_check_branch
        %384 = sbr.rel (%p382) target = $region32
      $region31: #{tpu_custom_call.1} parent=11 // pred_region
        _
      $region32: #{tpu_custom_call.1} parent=11 // pred_fallthru
        _
      // Predicated region
      $region33: #{tpu_custom_call.1} parent=11 // pred_check
        %p385 = pneg %p224
      $region34: #{tpu_custom_call.1} parent=11 // pred_check_branch
        %387 = sbr.rel (%p385) target = $region36
      $region35: #{tpu_custom_call.1} parent=11 // pred_region
        _
      $region36: #{tpu_custom_call.1} parent=11 // pred_fallthru
        _
      // Predicated region
      $region37: #{tpu_custom_call.1} parent=11 // pred_check
        %p388 = pneg %p245
      $region38: #{tpu_custom_call.1} parent=11 // pred_check_branch
        %390 = sbr.rel (%p388) target = $region40
      $region39: #{tpu_custom_call.1} parent=11 // pred_region
        _
      $region40: #{tpu_custom_call.1} parent=11 // pred_fallthru
        _
      // Predicated region
      $region41: #{tpu_custom_call.1} parent=11 // pred_check
        %p391 = pneg %p266
      $region42: #{tpu_custom_call.1} parent=11 // pred_check_branch
        %393 = sbr.rel (%p391) target = $region44
      $region43: #{tpu_custom_call.1} parent=11 // pred_region
        _
      $region44: #{tpu_custom_call.1} parent=11 // pred_fallthru
        _
      // Predicated region
      $region45: #{tpu_custom_call.1} parent=11 // pred_check
        %p394 = pneg %p287
      $region46: #{tpu_custom_call.1} parent=11 // pred_check_branch
        %396 = sbr.rel (%p394) target = $region48
      $region47: #{tpu_custom_call.1} parent=11 // pred_region
        _
      $region48: #{tpu_custom_call.1} parent=11 // pred_fallthru
        _
      // Predicated region
      $region49: #{tpu_custom_call.1} parent=11 // pred_check
        %p397 = pneg %p308
      $region50: #{tpu_custom_call.1} parent=11 // pred_check_branch
        %399 = sbr.rel (%p397) target = $region52
      $region51: #{tpu_custom_call.1} parent=11 // pred_region
        _
      $region52: #{tpu_custom_call.1} parent=11 // pred_fallthru
        _
      // Predicated region
      $region53: #{tpu_custom_call.1} parent=11 // pred_check
        %p400 = pneg %p329
      $region54: #{tpu_custom_call.1} parent=11 // pred_check_branch
        %402 = sbr.rel (%p400) target = $region56
      $region55: #{tpu_custom_call.1} parent=11 // pred_region
        _
      $region56: #{tpu_custom_call.1} parent=11 // pred_fallthru
        _
    $region12: #{tpu_custom_call.1} parent=5 // pred_fallthru
      _
    %p403 = scmp.lt.s32.totalorder %s20, 2
    // Predicated region
    $region57: #{tpu_custom_call.1} parent=5 // pred_check
      %p404 = pneg %p403
    $region58: #{tpu_custom_call.1} parent=5 // pred_check_branch
      %406 = sbr.rel (%p404) target = $region60
    $region59: #{tpu_custom_call.1} parent=5 // pred_region
      // Predicated region
      $region61: #{tpu_custom_call.1} parent=59 // pred_check
        %p407 = pneg %p40
      $region62: #{tpu_custom_call.1} parent=59 // pred_check_branch
        %409 = sbr.rel (%p407) target = $region64
      $region63: #{tpu_custom_call.1} parent=59 // pred_region
        %s410 = smul.u32 16, %s20
        %p411 = scmp.lt.s32.totalorder %s410, 31
        %s412 = scalar_select %p411, %s410, 31
        %s413 = smul.addr %s412, 8
        %s414 = scalar_lea.vmem %s0, %s413
        %s415 = smul.u32 16, %s20
      $region64: #{tpu_custom_call.1} parent=59 // pred_fallthru
        _
      // Predicated region
      $region65: #{tpu_custom_call.1} parent=59 // pred_check
        %p416 = pneg %p66
      $region66: #{tpu_custom_call.1} parent=59 // pred_check_branch
        %418 = sbr.rel (%p416) target = $region68
      $region67: #{tpu_custom_call.1} parent=59 // pred_region
        %s419 = smul.u32 16, %s20
        %p420 = scmp.lt.s32.totalorder %s419, 31
        %s421 = scalar_select %p420, %s419, 31
        %s422 = smul.addr %s421, 8
        %s423 = scalar_lea.vmem %s1, %s422
        %s424 = smul.u32 16, %s20
      $region68: #{tpu_custom_call.1} parent=59 // pred_fallthru
        _
      // Predicated region
      $region69: #{tpu_custom_call.1} parent=59 // pred_check
        %p425 = pneg %p92
      $region70: #{tpu_custom_call.1} parent=59 // pred_check_branch
        %427 = sbr.rel (%p425) target = $region72
      $region71: #{tpu_custom_call.1} parent=59 // pred_region
        %s428 = smul.u32 16, %s20
        %p429 = scmp.lt.s32.totalorder %s428, 31
        %s430 = scalar_select %p429, %s428, 31
        %s431 = smul.addr %s430, 8
        %s432 = scalar_lea.vmem %s2, %s431
        %s433 = smul.u32 16, %s20
      $region72: #{tpu_custom_call.1} parent=59 // pred_fallthru
        _
    $region60: #{tpu_custom_call.1} parent=5 // pred_fallthru
      _
    %p434 = scmp.le.s32.totalorder 1, %s20
    %p435 = scmp.lt.s32.totalorder %s20, 3
    %p436 = pnand %p434, %p435
    %p437 = pneg %p436
    // Predicated region
    $region73: #{tpu_custom_call.1} parent=5 // pred_check
      _
    $region74: #{tpu_custom_call.1} parent=5 // pred_check_branch
      %439 = sbr.rel (%p436) target = $region76
    $region75: #{tpu_custom_call.1} parent=5 // pred_region
      %s440 = ssub.s32 %s20, 1
      %s441 = smul.u32 16, %s25
      %p442 = scmp.lt.s32.totalorder %s441, 31
      %s443 = scalar_select %p442, %s441, 31
      %s444 = smul.addr %s443, 8
      %s445 = scalar_lea.vmem %s0, %s444
      %p446 = pneg %p46
      %p447 = pneg %p43
      %s448 = smul.u32 16, %s25
      %p449 = scmp.lt.s32.totalorder %s448, 31
      %s450 = scalar_select %p449, %s448, 31
      %s451 = smul.addr %s450, 8
      %s452 = scalar_lea.vmem %s1, %s451
      %p453 = pneg %p72
      %p454 = pneg %p69
      %s455 = smul.u32 16, %s25
      %p456 = scmp.lt.s32.totalorder %s455, 31
      %s457 = scalar_select %p456, %s455, 31
      %s458 = smul.addr %s457, 8
      %s459 = scalar_lea.vmem %s2, %s458
      %p460 = pneg %p98
      %p461 = pneg %p95
      %p462 = pneg %p119
      %p463 = pneg %p116
      %p464 = pneg %p140
      %p465 = pneg %p137
      %p466 = pneg %p161
      %p467 = pneg %p158
      %p468 = pneg %p182
      %p469 = pneg %p179
      %p470 = pneg %p203
      %p471 = pneg %p200
      %p472 = pneg %p224
      %p473 = pneg %p221
      %p474 = pneg %p245
      %p475 = pneg %p242
      %p476 = pneg %p266
      %p477 = pneg %p263
      %p478 = pneg %p287
      %p479 = pneg %p284
      %p480 = pneg %p308
      %p481 = pneg %p305
      %p482 = pneg %p329
      %p483 = pneg %p326
      %p484 = pneg %p355
      %p485 = pneg %p352
      %s486 = smul.u32 16, %s25
      %p487 = scmp.lt.s32.totalorder %s486, 31
      %s488 = scalar_select %p487, %s486, 31
      %s489 = smul.addr %s488, 8
      %s490 = scalar_lea.vmem %s14, %s489
      %s491 = smul.u32 16, %s25
      %p492 = scmp.lt.s32.totalorder %s491, 31
      %s493 = scalar_select %p492, %s491, 31
      %s494 = smul.addr %s493, 8
      %s495 = scalar_lea.vmem %s0, %s494
      %s496 = smul.u32 16, %s25
      %s497 = smul.u32 16, %s25
      %p498 = scmp.lt.s32.totalorder %s497, 31
      %s499 = scalar_select %p498, %s497, 31
      %s500 = smul.addr %s499, 8
      %s501 = scalar_lea.vmem %s1, %s500
      %s502 = smul.u32 16, %s25
      %s503 = smul.u32 16, %s25
      %p504 = scmp.lt.s32.totalorder %s503, 31
      %s505 = scalar_select %p504, %s503, 31
      %s506 = smul.addr %s505, 8
      %s507 = scalar_lea.vmem %s2, %s506
      %s508 = smul.u32 16, %s25
      %s509 = smul.u32 16, %s25
      %p510 = scmp.lt.s32.totalorder %s509, 31
      %s511 = scalar_select %p510, %s509, 31
      %s512 = smul.addr %s511, 8
      %s513 = scalar_lea.vmem %s14, %s512
      %s514 = smul.u32 16, %s25
      %v515 = vld [vmem:[%s501] sm:$0xff]
      %v516 = vld [vmem:[%s501 + $0x8] sm:$0xff]
      %v517 = vld [vmem:[%s501 + $0x10] sm:$0xff]
      %v518 = vld [vmem:[%s501 + $0x18] sm:$0xff]
      %v519 = vld [vmem:[%s501 + $0x20] sm:$0xff]
      %v520 = vld [vmem:[%s501 + $0x28] sm:$0xff]
      %v521 = vld [vmem:[%s501 + $0x30] sm:$0xff]
      %v522 = vld [vmem:[%s501 + $0x38] sm:$0xff]
      %v523 = vld [vmem:[%s501 + $0x40] sm:$0xff]
      %v524 = vld [vmem:[%s501 + $0x48] sm:$0xff]
      %v525 = vld [vmem:[%s501 + $0x50] sm:$0xff]
      %v526 = vld [vmem:[%s501 + $0x58] sm:$0xff]
      %v527 = vld [vmem:[%s501 + $0x60] sm:$0xff]
      %v528 = vld [vmem:[%s501 + $0x68] sm:$0xff]
      %v529 = vld [vmem:[%s501 + $0x70] sm:$0xff]
      %v530 = vld [vmem:[%s501 + $0x78] sm:$0xff]
      %v531 = vld [vmem:[%s3] sm:$0xff]
      %v532 = vld [vmem:[%s507] sm:$0xff]
      %v533 = vld [vmem:[%s507 + $0x8] sm:$0xff]
      %v534 = vld [vmem:[%s507 + $0x10] sm:$0xff]
      %v535 = vld [vmem:[%s507 + $0x18] sm:$0xff]
      %v536 = vld [vmem:[%s507 + $0x20] sm:$0xff]
      %v537 = vld [vmem:[%s507 + $0x28] sm:$0xff]
      %v538 = vld [vmem:[%s507 + $0x30] sm:$0xff]
      %v539 = vld [vmem:[%s507 + $0x38] sm:$0xff]
      %v540 = vld [vmem:[%s507 + $0x40] sm:$0xff]
      %v541 = vld [vmem:[%s507 + $0x48] sm:$0xff]
      %v542 = vld [vmem:[%s507 + $0x50] sm:$0xff]
      %v543 = vld [vmem:[%s507 + $0x58] sm:$0xff]
      %v544 = vld [vmem:[%s507 + $0x60] sm:$0xff]
      %v545 = vld [vmem:[%s507 + $0x68] sm:$0xff]
      %v546 = vld [vmem:[%s507 + $0x70] sm:$0xff]
      %v547 = vld [vmem:[%s507 + $0x78] sm:$0xff]
      %v548 = vld [vmem:[%s4] sm:$0xff]
      %vm549 = vcmask 64512
      %v551 = vsel %vm549, %v532, 0
      %v554 = vsel %vm549, %v533, 0
      %v557 = vsel %vm549, %v534, 0
      %v560 = vsel %vm549, %v535, 0
      %v563 = vsel %vm549, %v536, 0
      %v566 = vsel %vm549, %v537, 0
      %v569 = vsel %vm549, %v538, 0
      %v572 = vsel %vm549, %v539, 0
      %v575 = vsel %vm549, %v540, 0
      %v578 = vsel %vm549, %v541, 0
      %v581 = vsel %vm549, %v542, 0
      %v584 = vsel %vm549, %v543, 0
      %v587 = vsel %vm549, %v544, 0
      %v590 = vsel %vm549, %v545, 0
      %v593 = vsel %vm549, %v546, 0
      %v596 = vsel %vm549, %v547, 0
      %598 = vmatprep.subr.mxu0 0.0
      %599 = vmatpush1.msra.mxu0 0.0
      %600 = vmatprep.subr.mxu0 0.0
      %601 = vmatpush1.msra.mxu0 0.0
      %602 = vmatprep.subr.mxu0 0.0
      %603 = vmatpush1.msra.mxu0 0.0
      %604 = vmatprep.subr.mxu0 0.0
      %605 = vmatpush1.msra.mxu0 0.0
      %606 = vmatprep.subr.mxu0 0.0
      %607 = vmatpush1.msra.mxu0 0.0
      %608 = vmatprep.subr.mxu0 0.0
      %609 = vmatpush1.msra.mxu0 0.0
      %610 = vmatprep.subr.mxu0 0.0
      %611 = vmatpush1.msra.mxu0 0.0
      %612 = vmatprep.subr.mxu0 0.0
      %613 = vmatpush1.msra.mxu0 0.0
      %614 = vmatprep.subr.mxu0 0.0
      %615 = vmatpush1.msra.mxu0 0.0
      %616 = vmatprep.subr.mxu0 0.0
      %617 = vmatpush1.msra.mxu0 0.0
      %618 = vmatprep.subr.mxu0 0.0
      %619 = vmatpush1.msra.mxu0 0.0
      %620 = vmatprep.subr.mxu0 0.0
      %621 = vmatpush1.msra.mxu0 0.0
      %622 = vmatprep.subr.mxu0 0.0
      %623 = vmatpush1.msra.mxu0 0.0
      %624 = vmatprep.subr.mxu0 0.0
      %625 = vmatpush1.msra.mxu0 0.0
      %626 = vmatprep.subr.mxu0 0.0
      %627 = vmatpush1.msra.mxu0 0.0
      %628 = vmatprep.subr.mxu0 0.0
      %629 = vmatpush1.msra.mxu0 %v548
      %630 = vmatprep.subr.mxu0 0.0
      %631 = vmatpush2.msra.mxu0 0.0
      %632 = vmatprep.subr.mxu0 0.0
      %633 = vmatpush2.msra.mxu0 0.0
      %634 = vmatprep.subr.mxu0 0.0
      %635 = vmatpush2.msra.mxu0 0.0
      %636 = vmatprep.subr.mxu0 0.0
      %637 = vmatpush2.msra.mxu0 0.0
      %638 = vmatprep.subr.mxu0 0.0
      %639 = vmatpush2.msra.mxu0 0.0
      %640 = vmatprep.subr.mxu0 0.0
      %641 = vmatpush2.msra.mxu0 0.0
      %642 = vmatprep.subr.mxu0 0.0
      %643 = vmatpush2.msra.mxu0 0.0
      %644 = vmatprep.subr.mxu0 0.0
      %645 = vmatpush2.msra.mxu0 0.0
      %646 = vmatprep.subr.mxu0 0.0
      %647 = vmatpush2.msra.mxu0 0.0
      %648 = vmatprep.subr.mxu0 0.0
      %649 = vmatpush2.msra.mxu0 0.0
      %650 = vmatprep.subr.mxu0 0.0
      %651 = vmatpush2.msra.mxu0 0.0
      %652 = vmatprep.subr.mxu0 0.0
      %653 = vmatpush2.msra.mxu0 0.0
      %654 = vmatprep.subr.mxu0 0.0
      %655 = vmatpush2.msra.mxu0 0.0
      %656 = vmatprep.subr.mxu0 0.0
      %657 = vmatpush2.msra.mxu0 0.0
      %658 = vmatprep.subr.mxu0 0.0
      %659 = vmatpush2.msra.mxu0 0.0
      %660 = vmatprep.subr.mxu0 0.0
      %661 = vmatpush2.msra.mxu0 0.0
      %662 = vmatprep.mubr.f32.mxu0 0.0
      %663 = vmatmul.mubr.f32.gmra.mxu0 %v551
      %v664 = vpop.f32.mrf.mxu0
      %v665 = vadd.f32 0.0, %v664
      %v666 = vpop.f32.mrf.mxu0
      %667 = vmatprep.mubr.f32.mxu0 0.0
      %668 = vmatmul.mubr.f32.gmra.mxu0 %v554
      %v669 = vpop.f32.mrf.mxu0
      %v670 = vadd.f32 0.0, %v669
      %v671 = vpop.f32.mrf.mxu0
      %672 = vmatprep.mubr.f32.mxu0 0.0
      %673 = vmatmul.mubr.f32.gmra.mxu0 %v557
      %v674 = vpop.f32.mrf.mxu0
      %v675 = vadd.f32 0.0, %v674
      %v676 = vpop.f32.mrf.mxu0
      %677 = vmatprep.mubr.f32.mxu0 0.0
      %678 = vmatmul.mubr.f32.gmra.mxu0 %v560
      %v679 = vpop.f32.mrf.mxu0
      %v680 = vadd.f32 0.0, %v679
      %v681 = vpop.f32.mrf.mxu0
      %682 = vmatprep.mubr.f32.mxu0 0.0
      %683 = vmatmul.mubr.f32.gmra.mxu0 %v563
      %v684 = vpop.f32.mrf.mxu0
      %v685 = vadd.f32 0.0, %v684
      %v686 = vpop.f32.mrf.mxu0
      %687 = vmatprep.mubr.f32.mxu0 0.0
      %688 = vmatmul.mubr.f32.gmra.mxu0 %v566
      %v689 = vpop.f32.mrf.mxu0
      %v690 = vadd.f32 0.0, %v689
      %v691 = vpop.f32.mrf.mxu0
      %692 = vmatprep.mubr.f32.mxu0 0.0
      %693 = vmatmul.mubr.f32.gmra.mxu0 %v569
      %v694 = vpop.f32.mrf.mxu0
      %v695 = vadd.f32 0.0, %v694
      %v696 = vpop.f32.mrf.mxu0
      %697 = vmatprep.mubr.f32.mxu0 0.0
      %698 = vmatmul.mubr.f32.gmra.mxu0 %v572
      %v699 = vpop.f32.mrf.mxu0
      %v700 = vadd.f32 0.0, %v699
      %v701 = vpop.f32.mrf.mxu0
      %702 = vmatprep.mubr.f32.mxu0 0.0
      %703 = vmatmul.mubr.f32.gmra.mxu0 %v575
      %v704 = vpop.f32.mrf.mxu0
      %v705 = vadd.f32 0.0, %v704
      %v706 = vpop.f32.mrf.mxu0
      %707 = vmatprep.mubr.f32.mxu0 0.0
      %708 = vmatmul.mubr.f32.gmra.mxu0 %v578
      %v709 = vpop.f32.mrf.mxu0
      %v710 = vadd.f32 0.0, %v709
      %v711 = vpop.f32.mrf.mxu0
      %712 = vmatprep.mubr.f32.mxu0 0.0
      %713 = vmatmul.mubr.f32.gmra.mxu0 %v581
      %v714 = vpop.f32.mrf.mxu0
      %v715 = vadd.f32 0.0, %v714
      %v716 = vpop.f32.mrf.mxu0
      %717 = vmatprep.mubr.f32.mxu0 0.0
      %718 = vmatmul.mubr.f32.gmra.mxu0 %v584
      %v719 = vpop.f32.mrf.mxu0
      %v720 = vadd.f32 0.0, %v719
      %v721 = vpop.f32.mrf.mxu0
      %722 = vmatprep.mubr.f32.mxu0 0.0
      %723 = vmatmul.mubr.f32.gmra.mxu0 %v587
      %v724 = vpop.f32.mrf.mxu0
      %v725 = vadd.f32 0.0, %v724
      %v726 = vpop.f32.mrf.mxu0
      %727 = vmatprep.mubr.f32.mxu0 0.0
      %728 = vmatmul.mubr.f32.gmra.mxu0 %v590
      %v729 = vpop.f32.mrf.mxu0
      %v730 = vadd.f32 0.0, %v729
      %v731 = vpop.f32.mrf.mxu0
      %732 = vmatprep.mubr.f32.mxu0 0.0
      %733 = vmatmul.mubr.f32.gmra.mxu0 %v593
      %v734 = vpop.f32.mrf.mxu0
      %v735 = vadd.f32 0.0, %v734
      %v736 = vpop.f32.mrf.mxu0
      %737 = vmatprep.mubr.f32.mxu0 0.0
      %738 = vmatmul.mubr.f32.gmra.mxu0 %v596
      %v739 = vpop.f32.mrf.mxu0
      %v740 = vadd.f32 0.0, %v739
      %v741 = vpop.f32.mrf.mxu0
      %742 = vdwg.mxu0
      %v744 = vsel %vm549, %v515, 0
      %v747 = vsel %vm549, %v516, 0
      %v750 = vsel %vm549, %v517, 0
      %v753 = vsel %vm549, %v518, 0
      %v756 = vsel %vm549, %v519, 0
      %v759 = vsel %vm549, %v520, 0
      %v762 = vsel %vm549, %v521, 0
      %v765 = vsel %vm549, %v522, 0
      %v768 = vsel %vm549, %v523, 0
      %v771 = vsel %vm549, %v524, 0
      %v774 = vsel %vm549, %v525, 0
      %v777 = vsel %vm549, %v526, 0
      %v780 = vsel %vm549, %v527, 0
      %v783 = vsel %vm549, %v528, 0
      %v786 = vsel %vm549, %v529, 0
      %v789 = vsel %vm549, %v530, 0
      %791 = vmatprep.subr.mxu0 0.0
      %792 = vmatpush1.msra.mxu0 0.0
      %793 = vmatprep.subr.mxu0 0.0
      %794 = vmatpush1.msra.mxu0 0.0
      %795 = vmatprep.subr.mxu0 0.0
      %796 = vmatpush1.msra.mxu0 0.0
      %797 = vmatprep.subr.mxu0 0.0
      %798 = vmatpush1.msra.mxu0 0.0
      %799 = vmatprep.subr.mxu0 0.0
      %800 = vmatpush1.msra.mxu0 0.0
      %801 = vmatprep.subr.mxu0 0.0
      %802 = vmatpush1.msra.mxu0 0.0
      %803 = vmatprep.subr.mxu0 0.0
      %804 = vmatpush1.msra.mxu0 0.0
      %805 = vmatprep.subr.mxu0 0.0
      %806 = vmatpush1.msra.mxu0 0.0
      %807 = vmatprep.subr.mxu0 0.0
      %808 = vmatpush1.msra.mxu0 0.0
      %809 = vmatprep.subr.mxu0 0.0
      %810 = vmatpush1.msra.mxu0 0.0
      %811 = vmatprep.subr.mxu0 0.0
      %812 = vmatpush1.msra.mxu0 0.0
      %813 = vmatprep.subr.mxu0 0.0
      %814 = vmatpush1.msra.mxu0 0.0
      %815 = vmatprep.subr.mxu0 0.0
      %816 = vmatpush1.msra.mxu0 0.0
      %817 = vmatprep.subr.mxu0 0.0
      %818 = vmatpush1.msra.mxu0 0.0
      %819 = vmatprep.subr.mxu0 0.0
      %820 = vmatpush1.msra.mxu0 0.0
      %821 = vmatprep.subr.mxu0 0.0
      %822 = vmatpush1.msra.mxu0 %v531
      %823 = vmatprep.subr.mxu0 0.0
      %824 = vmatpush2.msra.mxu0 0.0
      %825 = vmatprep.subr.mxu0 0.0
      %826 = vmatpush2.msra.mxu0 0.0
      %827 = vmatprep.subr.mxu0 0.0
      %828 = vmatpush2.msra.mxu0 0.0
      %829 = vmatprep.subr.mxu0 0.0
      %830 = vmatpush2.msra.mxu0 0.0
      %831 = vmatprep.subr.mxu0 0.0
      %832 = vmatpush2.msra.mxu0 0.0
      %833 = vmatprep.subr.mxu0 0.0
      %834 = vmatpush2.msra.mxu0 0.0
      %835 = vmatprep.subr.mxu0 0.0
      %836 = vmatpush2.msra.mxu0 0.0
      %837 = vmatprep.subr.mxu0 0.0
      %838 = vmatpush2.msra.mxu0 0.0
      %839 = vmatprep.subr.mxu0 0.0
      %840 = vmatpush2.msra.mxu0 0.0
      %841 = vmatprep.subr.mxu0 0.0
      %842 = vmatpush2.msra.mxu0 0.0
      %843 = vmatprep.subr.mxu0 0.0
      %844 = vmatpush2.msra.mxu0 0.0
      %845 = vmatprep.subr.mxu0 0.0
      %846 = vmatpush2.msra.mxu0 0.0
      %847 = vmatprep.subr.mxu0 0.0
      %848 = vmatpush2.msra.mxu0 0.0
      %849 = vmatprep.subr.mxu0 0.0
      %850 = vmatpush2.msra.mxu0 0.0
      %851 = vmatprep.subr.mxu0 0.0
      %852 = vmatpush2.msra.mxu0 0.0
      %853 = vmatprep.subr.mxu0 0.0
      %854 = vmatpush2.msra.mxu0 0.0
      %855 = vmatprep.mubr.f32.mxu0 0.0
      %856 = vmatmul.mubr.f32.gmra.mxu0 %v744
      %v857 = vpop.f32.mrf.mxu0
      %v858 = vadd.f32 %v665, %v857
      %v859 = vpop.f32.mrf.mxu0
      %860 = vmatprep.mubr.f32.mxu0 0.0
      %861 = vmatmul.mubr.f32.gmra.mxu0 %v747
      %v862 = vpop.f32.mrf.mxu0
      %v863 = vadd.f32 %v670, %v862
      %v864 = vpop.f32.mrf.mxu0
      %865 = vmatprep.mubr.f32.mxu0 0.0
      %866 = vmatmul.mubr.f32.gmra.mxu0 %v750
      %v867 = vpop.f32.mrf.mxu0
      %v868 = vadd.f32 %v675, %v867
      %v869 = vpop.f32.mrf.mxu0
      %870 = vmatprep.mubr.f32.mxu0 0.0
      %871 = vmatmul.mubr.f32.gmra.mxu0 %v753
      %v872 = vpop.f32.mrf.mxu0
      %v873 = vadd.f32 %v680, %v872
      %v874 = vpop.f32.mrf.mxu0
      %875 = vmatprep.mubr.f32.mxu0 0.0
      %876 = vmatmul.mubr.f32.gmra.mxu0 %v756
      %v877 = vpop.f32.mrf.mxu0
      %v878 = vadd.f32 %v685, %v877
      %v879 = vpop.f32.mrf.mxu0
      %880 = vmatprep.mubr.f32.mxu0 0.0
      %881 = vmatmul.mubr.f32.gmra.mxu0 %v759
      %v882 = vpop.f32.mrf.mxu0
      %v883 = vadd.f32 %v690, %v882
      %v884 = vpop.f32.mrf.mxu0
      %885 = vmatprep.mubr.f32.mxu0 0.0
      %886 = vmatmul.mubr.f32.gmra.mxu0 %v762
      %v887 = vpop.f32.mrf.mxu0
      %v888 = vadd.f32 %v695, %v887
      %v889 = vpop.f32.mrf.mxu0
      %890 = vmatprep.mubr.f32.mxu0 0.0
      %891 = vmatmul.mubr.f32.gmra.mxu0 %v765
      %v892 = vpop.f32.mrf.mxu0
      %v893 = vadd.f32 %v700, %v892
      %v894 = vpop.f32.mrf.mxu0
      %895 = vmatprep.mubr.f32.mxu0 0.0
      %896 = vmatmul.mubr.f32.gmra.mxu0 %v768
      %v897 = vpop.f32.mrf.mxu0
      %v898 = vadd.f32 %v705, %v897
      %v899 = vpop.f32.mrf.mxu0
      %900 = vmatprep.mubr.f32.mxu0 0.0
      %901 = vmatmul.mubr.f32.gmra.mxu0 %v771
      %v902 = vpop.f32.mrf.mxu0
      %v903 = vadd.f32 %v710, %v902
      %v904 = vpop.f32.mrf.mxu0
      %905 = vmatprep.mubr.f32.mxu0 0.0
      %906 = vmatmul.mubr.f32.gmra.mxu0 %v774
      %v907 = vpop.f32.mrf.mxu0
      %v908 = vadd.f32 %v715, %v907
      %v909 = vpop.f32.mrf.mxu0
      %910 = vmatprep.mubr.f32.mxu0 0.0
      %911 = vmatmul.mubr.f32.gmra.mxu0 %v777
      %v912 = vpop.f32.mrf.mxu0
      %v913 = vadd.f32 %v720, %v912
      %v914 = vpop.f32.mrf.mxu0
      %915 = vmatprep.mubr.f32.mxu0 0.0
      %916 = vmatmul.mubr.f32.gmra.mxu0 %v780
      %v917 = vpop.f32.mrf.mxu0
      %v918 = vadd.f32 %v725, %v917
      %v919 = vpop.f32.mrf.mxu0
      %920 = vmatprep.mubr.f32.mxu0 0.0
      %921 = vmatmul.mubr.f32.gmra.mxu0 %v783
      %v922 = vpop.f32.mrf.mxu0
      %v923 = vadd.f32 %v730, %v922
      %v924 = vpop.f32.mrf.mxu0
      %925 = vmatprep.mubr.f32.mxu0 0.0
      %926 = vmatmul.mubr.f32.gmra.mxu0 %v786
      %v927 = vpop.f32.mrf.mxu0
      %v928 = vadd.f32 %v735, %v927
      %v929 = vpop.f32.mrf.mxu0
      %930 = vmatprep.mubr.f32.mxu0 0.0
      %931 = vmatmul.mubr.f32.gmra.mxu0 %v789
      %v932 = vpop.f32.mrf.mxu0
      %v933 = vadd.f32 %v740, %v932
      %v934 = vpop.f32.mrf.mxu0
      %935 = vdwg.mxu0
      %v936 = vld [vmem:[%s5] sm:$0x1]
      %v938 = vlaneseq
      %v939 = vshrl.u32 %v938, 7
      %v940 = vsub.s32 0, %v939
      %v941 = vrot.slane %v936, %v940
      %v943 = vadd.f32 %v858, %v941
      %v944 = vadd.f32 %v863, %v941
      %v945 = vadd.f32 %v868, %v941
      %v946 = vadd.f32 %v873, %v941
      %v947 = vadd.f32 %v878, %v941
      %v948 = vadd.f32 %v883, %v941
      %v949 = vadd.f32 %v888, %v941
      %v950 = vadd.f32 %v893, %v941
      %v951 = vadd.f32 %v898, %v941
      %v952 = vadd.f32 %v903, %v941
      %v953 = vadd.f32 %v908, %v941
      %v954 = vadd.f32 %v913, %v941
      %v955 = vadd.f32 %v918, %v941
      %v956 = vadd.f32 %v923, %v941
      %v957 = vadd.f32 %v928, %v941
      %v958 = vadd.f32 %v933, %v941
      %v959 = vld [vmem:[%s6] sm:$0xff]
      %v960 = vld [vmem:[%s6 + $0x8] sm:$0xff]
      %v961 = vld [vmem:[%s6 + $0x10] sm:$0xff]
      %v962 = vld [vmem:[%s6 + $0x18] sm:$0xff]
      %v963 = vld [vmem:[%s6 + $0x20] sm:$0xff]
      %v964 = vld [vmem:[%s6 + $0x28] sm:$0xff]
      %v965 = vld [vmem:[%s6 + $0x30] sm:$0xff]
      %v966 = vld [vmem:[%s6 + $0x38] sm:$0xff]
      %v967 = vld [vmem:[%s6 + $0x40] sm:$0xff]
      %v968 = vld [vmem:[%s6 + $0x48] sm:$0xff]
      %v969 = vld [vmem:[%s6 + $0x50] sm:$0xff]
      %v970 = vld [vmem:[%s6 + $0x58] sm:$0xff]
      %v971 = vld [vmem:[%s6 + $0x60] sm:$0xff]
      %v972 = vld [vmem:[%s6 + $0x68] sm:$0xff]
      %v973 = vld [vmem:[%s6 + $0x70] sm:$0xff]
      %v974 = vld [vmem:[%s6 + $0x78] sm:$0xff]
      %975 = vmatprep.subr.mxu0 0.0
      %976 = vmatpush1.msra.mxu0 %v974
      %977 = vmatprep.subr.mxu0 0.0
      %978 = vmatpush1.msra.mxu0 %v973
      %979 = vmatprep.subr.mxu0 0.0
      %980 = vmatpush1.msra.mxu0 %v972
      %981 = vmatprep.subr.mxu0 0.0
      %982 = vmatpush1.msra.mxu0 %v971
      %983 = vmatprep.subr.mxu0 0.0
      %984 = vmatpush1.msra.mxu0 %v970
      %985 = vmatprep.subr.mxu0 0.0
      %986 = vmatpush1.msra.mxu0 %v969
      %987 = vmatprep.subr.mxu0 0.0
      %988 = vmatpush1.msra.mxu0 %v968
      %989 = vmatprep.subr.mxu0 0.0
      %990 = vmatpush1.msra.mxu0 %v967
      %991 = vmatprep.subr.mxu0 0.0
      %992 = vmatpush1.msra.mxu0 %v966
      %993 = vmatprep.subr.mxu0 0.0
      %994 = vmatpush1.msra.mxu0 %v965
      %995 = vmatprep.subr.mxu0 0.0
      %996 = vmatpush1.msra.mxu0 %v964
      %997 = vmatprep.subr.mxu0 0.0
      %998 = vmatpush1.msra.mxu0 %v963
      %999 = vmatprep.subr.mxu0 0.0
      %1000 = vmatpush1.msra.mxu0 %v962
      %1001 = vmatprep.subr.mxu0 0.0
      %1002 = vmatpush1.msra.mxu0 %v961
      %1003 = vmatprep.subr.mxu0 0.0
      %1004 = vmatpush1.msra.mxu0 %v960
      %1005 = vmatprep.subr.mxu0 0.0
      %1006 = vmatpush1.msra.mxu0 %v959
      %1007 = vmatprep.subr.mxu0 0.0
      %1008 = vmatpush2.msra.mxu0 0.0
      %1009 = vmatprep.subr.mxu0 0.0
      %1010 = vmatpush2.msra.mxu0 0.0
      %1011 = vmatprep.subr.mxu0 0.0
      %1012 = vmatpush2.msra.mxu0 0.0
      %1013 = vmatprep.subr.mxu0 0.0
      %1014 = vmatpush2.msra.mxu0 0.0
      %1015 = vmatprep.subr.mxu0 0.0
      %1016 = vmatpush2.msra.mxu0 0.0
      %1017 = vmatprep.subr.mxu0 0.0
      %1018 = vmatpush2.msra.mxu0 0.0
      %1019 = vmatprep.subr.mxu0 0.0
      %1020 = vmatpush2.msra.mxu0 0.0
      %1021 = vmatprep.subr.mxu0 0.0
      %1022 = vmatpush2.msra.mxu0 0.0
      %1023 = vmatprep.subr.mxu0 0.0
      %1024 = vmatpush2.msra.mxu0 0.0
      %1025 = vmatprep.subr.mxu0 0.0
      %1026 = vmatpush2.msra.mxu0 0.0
      %1027 = vmatprep.subr.mxu0 0.0
      %1028 = vmatpush2.msra.mxu0 0.0
      %1029 = vmatprep.subr.mxu0 0.0
      %1030 = vmatpush2.msra.mxu0 0.0
      %1031 = vmatprep.subr.mxu0 0.0
      %1032 = vmatpush2.msra.mxu0 0.0
      %1033 = vmatprep.subr.mxu0 0.0
      %1034 = vmatpush2.msra.mxu0 0.0
      %1035 = vmatprep.subr.mxu0 0.0
      %1036 = vmatpush2.msra.mxu0 0.0
      %1037 = vmatprep.subr.mxu0 0.0
      %1038 = vmatpush2.msra.mxu0 0.0
      %1039 = vmatprep.mubr.f32.mxu0 0.0
      %1040 = vmatmul.mubr.f32.gmra.mxu0 %v943
      %v1041 = vpop.f32.mrf.mxu0
      %v1042 = vadd.f32 0.0, %v1041
      %v1043 = vpop.f32.mrf.mxu0
      %1044 = vmatprep.mubr.f32.mxu0 0.0
      %1045 = vmatmul.mubr.f32.gmra.mxu0 %v944
      %v1046 = vpop.f32.mrf.mxu0
      %v1047 = vadd.f32 0.0, %v1046
      %v1048 = vpop.f32.mrf.mxu0
      %1049 = vmatprep.mubr.f32.mxu0 0.0
      %1050 = vmatmul.mubr.f32.gmra.mxu0 %v945
      %v1051 = vpop.f32.mrf.mxu0
      %v1052 = vadd.f32 0.0, %v1051
      %v1053 = vpop.f32.mrf.mxu0
      %1054 = vmatprep.mubr.f32.mxu0 0.0
      %1055 = vmatmul.mubr.f32.gmra.mxu0 %v946
      %v1056 = vpop.f32.mrf.mxu0
      %v1057 = vadd.f32 0.0, %v1056
      %v1058 = vpop.f32.mrf.mxu0
      %1059 = vmatprep.mubr.f32.mxu0 0.0
      %1060 = vmatmul.mubr.f32.gmra.mxu0 %v947
      %v1061 = vpop.f32.mrf.mxu0
      %v1062 = vadd.f32 0.0, %v1061
      %v1063 = vpop.f32.mrf.mxu0
      %1064 = vmatprep.mubr.f32.mxu0 0.0
      %1065 = vmatmul.mubr.f32.gmra.mxu0 %v948
      %v1066 = vpop.f32.mrf.mxu0
      %v1067 = vadd.f32 0.0, %v1066
      %v1068 = vpop.f32.mrf.mxu0
      %1069 = vmatprep.mubr.f32.mxu0 0.0
      %1070 = vmatmul.mubr.f32.gmra.mxu0 %v949
      %v1071 = vpop.f32.mrf.mxu0
      %v1072 = vadd.f32 0.0, %v1071
      %v1073 = vpop.f32.mrf.mxu0
      %1074 = vmatprep.mubr.f32.mxu0 0.0
      %1075 = vmatmul.mubr.f32.gmra.mxu0 %v950
      %v1076 = vpop.f32.mrf.mxu0
      %v1077 = vadd.f32 0.0, %v1076
      %v1078 = vpop.f32.mrf.mxu0
      %1079 = vmatprep.mubr.f32.mxu0 0.0
      %1080 = vmatmul.mubr.f32.gmra.mxu0 %v951
      %v1081 = vpop.f32.mrf.mxu0
      %v1082 = vadd.f32 0.0, %v1081
      %v1083 = vpop.f32.mrf.mxu0
      %1084 = vmatprep.mubr.f32.mxu0 0.0
      %1085 = vmatmul.mubr.f32.gmra.mxu0 %v952
      %v1086 = vpop.f32.mrf.mxu0
      %v1087 = vadd.f32 0.0, %v1086
      %v1088 = vpop.f32.mrf.mxu0
      %1089 = vmatprep.mubr.f32.mxu0 0.0
      %1090 = vmatmul.mubr.f32.gmra.mxu0 %v953
      %v1091 = vpop.f32.mrf.mxu0
      %v1092 = vadd.f32 0.0, %v1091
      %v1093 = vpop.f32.mrf.mxu0
      %1094 = vmatprep.mubr.f32.mxu0 0.0
      %1095 = vmatmul.mubr.f32.gmra.mxu0 %v954
      %v1096 = vpop.f32.mrf.mxu0
      %v1097 = vadd.f32 0.0, %v1096
      %v1098 = vpop.f32.mrf.mxu0
      %1099 = vmatprep.mubr.f32.mxu0 0.0
      %1100 = vmatmul.mubr.f32.gmra.mxu0 %v955
      %v1101 = vpop.f32.mrf.mxu0
      %v1102 = vadd.f32 0.0, %v1101
      %v1103 = vpop.f32.mrf.mxu0
      %1104 = vmatprep.mubr.f32.mxu0 0.0
      %1105 = vmatmul.mubr.f32.gmra.mxu0 %v956
      %v1106 = vpop.f32.mrf.mxu0
      %v1107 = vadd.f32 0.0, %v1106
      %v1108 = vpop.f32.mrf.mxu0
      %1109 = vmatprep.mubr.f32.mxu0 0.0
      %1110 = vmatmul.mubr.f32.gmra.mxu0 %v957
      %v1111 = vpop.f32.mrf.mxu0
      %v1112 = vadd.f32 0.0, %v1111
      %v1113 = vpop.f32.mrf.mxu0
      %1114 = vmatprep.mubr.f32.mxu0 0.0
      %1115 = vmatmul.mubr.f32.gmra.mxu0 %v958
      %v1116 = vpop.f32.mrf.mxu0
      %v1117 = vadd.f32 0.0, %v1116
      %v1118 = vpop.f32.mrf.mxu0
      %1119 = vdwg.mxu0
      %v1120 = vld [vmem:[%s7] sm:$0x1]
      %v1122 = vlaneseq
      %v1123 = vshrl.u32 %v1122, 7
      %v1124 = vsub.s32 0, %v1123
      %v1125 = vrot.slane %v1120, %v1124
      %v1127 = vmul.f32 %v1042, %v1125
      %v1128 = vmul.f32 %v1047, %v1125
      %v1129 = vmul.f32 %v1052, %v1125
      %v1130 = vmul.f32 %v1057, %v1125
      %v1131 = vmul.f32 %v1062, %v1125
      %v1132 = vmul.f32 %v1067, %v1125
      %v1133 = vmul.f32 %v1072, %v1125
      %v1134 = vmul.f32 %v1077, %v1125
      %v1135 = vmul.f32 %v1082, %v1125
      %v1136 = vmul.f32 %v1087, %v1125
      %v1137 = vmul.f32 %v1092, %v1125
      %v1138 = vmul.f32 %v1097, %v1125
      %v1139 = vmul.f32 %v1102, %v1125
      %v1140 = vmul.f32 %v1107, %v1125
      %v1141 = vmul.f32 %v1112, %v1125
      %v1142 = vmul.f32 %v1117, %v1125
      %v1143 = vld [vmem:[%s8] sm:$0x1]
      %v1145 = vlaneseq
      %v1146 = vshrl.u32 %v1145, 7
      %v1147 = vsub.s32 0, %v1146
      %v1148 = vrot.slane %v1143, %v1147
      %v1150 = vadd.f32 %v1127, %v1148
      %v1151 = vadd.f32 %v1128, %v1148
      %v1152 = vadd.f32 %v1129, %v1148
      %v1153 = vadd.f32 %v1130, %v1148
      %v1154 = vadd.f32 %v1131, %v1148
      %v1155 = vadd.f32 %v1132, %v1148
      %v1156 = vadd.f32 %v1133, %v1148
      %v1157 = vadd.f32 %v1134, %v1148
      %v1158 = vadd.f32 %v1135, %v1148
      %v1159 = vadd.f32 %v1136, %v1148
      %v1160 = vadd.f32 %v1137, %v1148
      %v1161 = vadd.f32 %v1138, %v1148
      %v1162 = vadd.f32 %v1139, %v1148
      %v1163 = vadd.f32 %v1140, %v1148
      %v1164 = vadd.f32 %v1141, %v1148
      %v1165 = vadd.f32 %v1142, %v1148
      %v1166 = vmul.f32 %v1150, 0.5
      %v1167 = vmul.f32 %v1151, 0.5
      %v1168 = vmul.f32 %v1152, 0.5
      %v1169 = vmul.f32 %v1153, 0.5
      %v1170 = vmul.f32 %v1154, 0.5
      %v1171 = vmul.f32 %v1155, 0.5
      %v1172 = vmul.f32 %v1156, 0.5
      %v1173 = vmul.f32 %v1157, 0.5
      %v1174 = vmul.f32 %v1158, 0.5
      %v1175 = vmul.f32 %v1159, 0.5
      %v1176 = vmul.f32 %v1160, 0.5
      %v1177 = vmul.f32 %v1161, 0.5
      %v1178 = vmul.f32 %v1162, 0.5
      %v1179 = vmul.f32 %v1163, 0.5
      %v1180 = vmul.f32 %v1164, 0.5
      %v1181 = vmul.f32 %v1165, 0.5
      %v1182 = vmul.f32 %v1150, %v1150
      %v1183 = vmul.f32 %v1151, %v1151
      %v1184 = vmul.f32 %v1152, %v1152
      %v1185 = vmul.f32 %v1153, %v1153
      %v1186 = vmul.f32 %v1154, %v1154
      %v1187 = vmul.f32 %v1155, %v1155
      %v1188 = vmul.f32 %v1156, %v1156
      %v1189 = vmul.f32 %v1157, %v1157
      %v1190 = vmul.f32 %v1158, %v1158
      %v1191 = vmul.f32 %v1159, %v1159
      %v1192 = vmul.f32 %v1160, %v1160
      %v1193 = vmul.f32 %v1161, %v1161
      %v1194 = vmul.f32 %v1162, %v1162
      %v1195 = vmul.f32 %v1163, %v1163
      %v1196 = vmul.f32 %v1164, %v1164
      %v1197 = vmul.f32 %v1165, %v1165
      %v1198 = vmul.f32 %v1182, %v1150
      %v1199 = vmul.f32 %v1183, %v1151
      %v1200 = vmul.f32 %v1184, %v1152
      %v1201 = vmul.f32 %v1185, %v1153
      %v1202 = vmul.f32 %v1186, %v1154
      %v1203 = vmul.f32 %v1187, %v1155
      %v1204 = vmul.f32 %v1188, %v1156
      %v1205 = vmul.f32 %v1189, %v1157
      %v1206 = vmul.f32 %v1190, %v1158
      %v1207 = vmul.f32 %v1191, %v1159
      %v1208 = vmul.f32 %v1192, %v1160
      %v1209 = vmul.f32 %v1193, %v1161
      %v1210 = vmul.f32 %v1194, %v1162
      %v1211 = vmul.f32 %v1195, %v1163
      %v1212 = vmul.f32 %v1196, %v1164
      %v1213 = vmul.f32 %v1197, %v1165
      %v1214 = vmul.f32 %v1198, 0.044715
      %v1215 = vmul.f32 %v1199, 0.044715
      %v1216 = vmul.f32 %v1200, 0.044715
      %v1217 = vmul.f32 %v1201, 0.044715
      %v1218 = vmul.f32 %v1202, 0.044715
      %v1219 = vmul.f32 %v1203, 0.044715
      %v1220 = vmul.f32 %v1204, 0.044715
      %v1221 = vmul.f32 %v1205, 0.044715
      %v1222 = vmul.f32 %v1206, 0.044715
      %v1223 = vmul.f32 %v1207, 0.044715
      %v1224 = vmul.f32 %v1208, 0.044715
      %v1225 = vmul.f32 %v1209, 0.044715
      %v1226 = vmul.f32 %v1210, 0.044715
      %v1227 = vmul.f32 %v1211, 0.044715
      %v1228 = vmul.f32 %v1212, 0.044715
      %v1229 = vmul.f32 %v1213, 0.044715
      %v1230 = vadd.f32 %v1150, %v1214
      %v1231 = vadd.f32 %v1151, %v1215
      %v1232 = vadd.f32 %v1152, %v1216
      %v1233 = vadd.f32 %v1153, %v1217
      %v1234 = vadd.f32 %v1154, %v1218
      %v1235 = vadd.f32 %v1155, %v1219
      %v1236 = vadd.f32 %v1156, %v1220
      %v1237 = vadd.f32 %v1157, %v1221
      %v1238 = vadd.f32 %v1158, %v1222
      %v1239 = vadd.f32 %v1159, %v1223
      %v1240 = vadd.f32 %v1160, %v1224
      %v1241 = vadd.f32 %v1161, %v1225
      %v1242 = vadd.f32 %v1162, %v1226
      %v1243 = vadd.f32 %v1163, %v1227
      %v1244 = vadd.f32 %v1164, %v1228
      %v1245 = vadd.f32 %v1165, %v1229
      %v1246 = vmul.f32 %v1230, 0.7978846
      %v1247 = vmul.f32 %v1231, 0.7978846
      %v1248 = vmul.f32 %v1232, 0.7978846
      %v1249 = vmul.f32 %v1233, 0.7978846
      %v1250 = vmul.f32 %v1234, 0.7978846
      %v1251 = vmul.f32 %v1235, 0.7978846
      %v1252 = vmul.f32 %v1236, 0.7978846
      %v1253 = vmul.f32 %v1237, 0.7978846
      %v1254 = vmul.f32 %v1238, 0.7978846
      %v1255 = vmul.f32 %v1239, 0.7978846
      %v1256 = vmul.f32 %v1240, 0.7978846
      %v1257 = vmul.f32 %v1241, 0.7978846
      %v1258 = vmul.f32 %v1242, 0.7978846
      %v1259 = vmul.f32 %v1243, 0.7978846
      %v1260 = vmul.f32 %v1244, 0.7978846
      %v1261 = vmul.f32 %v1245, 0.7978846
      %v1262 = vtanh.pop %v1246
      %v1263 = vtanh.pop %v1247
      %v1264 = vtanh.pop %v1248
      %v1265 = vtanh.pop %v1249
      %v1266 = vtanh.pop %v1250
      %v1267 = vtanh.pop %v1251
      %v1268 = vtanh.pop %v1252
      %v1269 = vtanh.pop %v1253
      %v1270 = vtanh.pop %v1254
      %v1271 = vtanh.pop %v1255
      %v1272 = vtanh.pop %v1256
      %v1273 = vtanh.pop %v1257
      %v1274 = vtanh.pop %v1258
      %v1275 = vtanh.pop %v1259
      %v1276 = vtanh.pop %v1260
      %v1277 = vtanh.pop %v1261
      %v1278 = vadd.f32 %v1262, 1.0
      %v1279 = vadd.f32 %v1263, 1.0
      %v1280 = vadd.f32 %v1264, 1.0
      %v1281 = vadd.f32 %v1265, 1.0
      %v1282 = vadd.f32 %v1266, 1.0
      %v1283 = vadd.f32 %v1267, 1.0
      %v1284 = vadd.f32 %v1268, 1.0
      %v1285 = vadd.f32 %v1269, 1.0
      %v1286 = vadd.f32 %v1270, 1.0
      %v1287 = vadd.f32 %v1271, 1.0
      %v1288 = vadd.f32 %v1272, 1.0
      %v1289 = vadd.f32 %v1273, 1.0
      %v1290 = vadd.f32 %v1274, 1.0
      %v1291 = vadd.f32 %v1275, 1.0
      %v1292 = vadd.f32 %v1276, 1.0
      %v1293 = vadd.f32 %v1277, 1.0
      %v1294 = vmul.f32 %v1166, %v1278
      %v1295 = vmul.f32 %v1167, %v1279
      %v1296 = vmul.f32 %v1168, %v1280
      %v1297 = vmul.f32 %v1169, %v1281
      %v1298 = vmul.f32 %v1170, %v1282
      %v1299 = vmul.f32 %v1171, %v1283
      %v1300 = vmul.f32 %v1172, %v1284
      %v1301 = vmul.f32 %v1173, %v1285
      %v1302 = vmul.f32 %v1174, %v1286
      %v1303 = vmul.f32 %v1175, %v1287
      %v1304 = vmul.f32 %v1176, %v1288
      %v1305 = vmul.f32 %v1177, %v1289
      %v1306 = vmul.f32 %v1178, %v1290
      %v1307 = vmul.f32 %v1179, %v1291
      %v1308 = vmul.f32 %v1180, %v1292
      %v1309 = vmul.f32 %v1181, %v1293
      %v1310 = vld [vmem:[%s9] sm:$0xff]
      %v1311 = vld [vmem:[%s9 + $0x8] sm:$0xff]
      %v1312 = vld [vmem:[%s9 + $0x10] sm:$0xff]
      %v1313 = vld [vmem:[%s9 + $0x18] sm:$0xff]
      %v1314 = vld [vmem:[%s9 + $0x20] sm:$0xff]
      %v1315 = vld [vmem:[%s9 + $0x28] sm:$0xff]
      %v1316 = vld [vmem:[%s9 + $0x30] sm:$0xff]
      %v1317 = vld [vmem:[%s9 + $0x38] sm:$0xff]
      %v1318 = vld [vmem:[%s9 + $0x40] sm:$0xff]
      %v1319 = vld [vmem:[%s9 + $0x48] sm:$0xff]
      %v1320 = vld [vmem:[%s9 + $0x50] sm:$0xff]
      %v1321 = vld [vmem:[%s9 + $0x58] sm:$0xff]
      %v1322 = vld [vmem:[%s9 + $0x60] sm:$0xff]
      %v1323 = vld [vmem:[%s9 + $0x68] sm:$0xff]
      %v1324 = vld [vmem:[%s9 + $0x70] sm:$0xff]
      %v1325 = vld [vmem:[%s9 + $0x78] sm:$0xff]
      %1326 = vmatprep.subr.mxu0 0.0
      %1327 = vmatpush1.msra.mxu0 %v1325
      %1328 = vmatprep.subr.mxu0 0.0
      %1329 = vmatpush1.msra.mxu0 %v1324
      %1330 = vmatprep.subr.mxu0 0.0
      %1331 = vmatpush1.msra.mxu0 %v1323
      %1332 = vmatprep.subr.mxu0 0.0
      %1333 = vmatpush1.msra.mxu0 %v1322
      %1334 = vmatprep.subr.mxu0 0.0
      %1335 = vmatpush1.msra.mxu0 %v1321
      %1336 = vmatprep.subr.mxu0 0.0
      %1337 = vmatpush1.msra.mxu0 %v1320
      %1338 = vmatprep.subr.mxu0 0.0
      %1339 = vmatpush1.msra.mxu0 %v1319
      %1340 = vmatprep.subr.mxu0 0.0
      %1341 = vmatpush1.msra.mxu0 %v1318
      %1342 = vmatprep.subr.mxu0 0.0
      %1343 = vmatpush1.msra.mxu0 %v1317
      %1344 = vmatprep.subr.mxu0 0.0
      %1345 = vmatpush1.msra.mxu0 %v1316
      %1346 = vmatprep.subr.mxu0 0.0
      %1347 = vmatpush1.msra.mxu0 %v1315
      %1348 = vmatprep.subr.mxu0 0.0
      %1349 = vmatpush1.msra.mxu0 %v1314
      %1350 = vmatprep.subr.mxu0 0.0
      %1351 = vmatpush1.msra.mxu0 %v1313
      %1352 = vmatprep.subr.mxu0 0.0
      %1353 = vmatpush1.msra.mxu0 %v1312
      %1354 = vmatprep.subr.mxu0 0.0
      %1355 = vmatpush1.msra.mxu0 %v1311
      %1356 = vmatprep.subr.mxu0 0.0
      %1357 = vmatpush1.msra.mxu0 %v1310
      %1358 = vmatprep.subr.mxu0 0.0
      %1359 = vmatpush2.msra.mxu0 0.0
      %1360 = vmatprep.subr.mxu0 0.0
      %1361 = vmatpush2.msra.mxu0 0.0
      %1362 = vmatprep.subr.mxu0 0.0
      %1363 = vmatpush2.msra.mxu0 0.0
      %1364 = vmatprep.subr.mxu0 0.0
      %1365 = vmatpush2.msra.mxu0 0.0
      %1366 = vmatprep.subr.mxu0 0.0
      %1367 = vmatpush2.msra.mxu0 0.0
      %1368 = vmatprep.subr.mxu0 0.0
      %1369 = vmatpush2.msra.mxu0 0.0
      %1370 = vmatprep.subr.mxu0 0.0
      %1371 = vmatpush2.msra.mxu0 0.0
      %1372 = vmatprep.subr.mxu0 0.0
      %1373 = vmatpush2.msra.mxu0 0.0
      %1374 = vmatprep.subr.mxu0 0.0
      %1375 = vmatpush2.msra.mxu0 0.0
      %1376 = vmatprep.subr.mxu0 0.0
      %1377 = vmatpush2.msra.mxu0 0.0
      %1378 = vmatprep.subr.mxu0 0.0
      %1379 = vmatpush2.msra.mxu0 0.0
      %1380 = vmatprep.subr.mxu0 0.0
      %1381 = vmatpush2.msra.mxu0 0.0
      %1382 = vmatprep.subr.mxu0 0.0
      %1383 = vmatpush2.msra.mxu0 0.0
      %1384 = vmatprep.subr.mxu0 0.0
      %1385 = vmatpush2.msra.mxu0 0.0
      %1386 = vmatprep.subr.mxu0 0.0
      %1387 = vmatpush2.msra.mxu0 0.0
      %1388 = vmatprep.subr.mxu0 0.0
      %1389 = vmatpush2.msra.mxu0 0.0
      %1390 = vmatprep.mubr.f32.mxu0 0.0
      %1391 = vmatmul.mubr.f32.gmra.mxu0 %v1294
      %v1392 = vpop.f32.mrf.mxu0
      %v1393 = vadd.f32 0.0, %v1392
      %v1394 = vpop.f32.mrf.mxu0
      %1395 = vmatprep.mubr.f32.mxu0 0.0
      %1396 = vmatmul.mubr.f32.gmra.mxu0 %v1295
      %v1397 = vpop.f32.mrf.mxu0
      %v1398 = vadd.f32 0.0, %v1397
      %v1399 = vpop.f32.mrf.mxu0
      %1400 = vmatprep.mubr.f32.mxu0 0.0
      %1401 = vmatmul.mubr.f32.gmra.mxu0 %v1296
      %v1402 = vpop.f32.mrf.mxu0
      %v1403 = vadd.f32 0.0, %v1402
      %v1404 = vpop.f32.mrf.mxu0
      %1405 = vmatprep.mubr.f32.mxu0 0.0
      %1406 = vmatmul.mubr.f32.gmra.mxu0 %v1297
      %v1407 = vpop.f32.mrf.mxu0
      %v1408 = vadd.f32 0.0, %v1407
      %v1409 = vpop.f32.mrf.mxu0
      %1410 = vmatprep.mubr.f32.mxu0 0.0
      %1411 = vmatmul.mubr.f32.gmra.mxu0 %v1298
      %v1412 = vpop.f32.mrf.mxu0
      %v1413 = vadd.f32 0.0, %v1412
      %v1414 = vpop.f32.mrf.mxu0
      %1415 = vmatprep.mubr.f32.mxu0 0.0
      %1416 = vmatmul.mubr.f32.gmra.mxu0 %v1299
      %v1417 = vpop.f32.mrf.mxu0
      %v1418 = vadd.f32 0.0, %v1417
      %v1419 = vpop.f32.mrf.mxu0
      %1420 = vmatprep.mubr.f32.mxu0 0.0
      %1421 = vmatmul.mubr.f32.gmra.mxu0 %v1300
      %v1422 = vpop.f32.mrf.mxu0
      %v1423 = vadd.f32 0.0, %v1422
      %v1424 = vpop.f32.mrf.mxu0
      %1425 = vmatprep.mubr.f32.mxu0 0.0
      %1426 = vmatmul.mubr.f32.gmra.mxu0 %v1301
      %v1427 = vpop.f32.mrf.mxu0
      %v1428 = vadd.f32 0.0, %v1427
      %v1429 = vpop.f32.mrf.mxu0
      %1430 = vmatprep.mubr.f32.mxu0 0.0
      %1431 = vmatmul.mubr.f32.gmra.mxu0 %v1302
      %v1432 = vpop.f32.mrf.mxu0
      %v1433 = vadd.f32 0.0, %v1432
      %v1434 = vpop.f32.mrf.mxu0
      %1435 = vmatprep.mubr.f32.mxu0 0.0
      %1436 = vmatmul.mubr.f32.gmra.mxu0 %v1303
      %v1437 = vpop.f32.mrf.mxu0
      %v1438 = vadd.f32 0.0, %v1437
      %v1439 = vpop.f32.mrf.mxu0
      %1440 = vmatprep.mubr.f32.mxu0 0.0
      %1441 = vmatmul.mubr.f32.gmra.mxu0 %v1304
      %v1442 = vpop.f32.mrf.mxu0
      %v1443 = vadd.f32 0.0, %v1442
      %v1444 = vpop.f32.mrf.mxu0
      %1445 = vmatprep.mubr.f32.mxu0 0.0
      %1446 = vmatmul.mubr.f32.gmra.mxu0 %v1305
      %v1447 = vpop.f32.mrf.mxu0
      %v1448 = vadd.f32 0.0, %v1447
      %v1449 = vpop.f32.mrf.mxu0
      %1450 = vmatprep.mubr.f32.mxu0 0.0
      %1451 = vmatmul.mubr.f32.gmra.mxu0 %v1306
      %v1452 = vpop.f32.mrf.mxu0
      %v1453 = vadd.f32 0.0, %v1452
      %v1454 = vpop.f32.mrf.mxu0
      %1455 = vmatprep.mubr.f32.mxu0 0.0
      %1456 = vmatmul.mubr.f32.gmra.mxu0 %v1307
      %v1457 = vpop.f32.mrf.mxu0
      %v1458 = vadd.f32 0.0, %v1457
      %v1459 = vpop.f32.mrf.mxu0
      %1460 = vmatprep.mubr.f32.mxu0 0.0
      %1461 = vmatmul.mubr.f32.gmra.mxu0 %v1308
      %v1462 = vpop.f32.mrf.mxu0
      %v1463 = vadd.f32 0.0, %v1462
      %v1464 = vpop.f32.mrf.mxu0
      %1465 = vmatprep.mubr.f32.mxu0 0.0
      %1466 = vmatmul.mubr.f32.gmra.mxu0 %v1309
      %v1467 = vpop.f32.mrf.mxu0
      %v1468 = vadd.f32 0.0, %v1467
      %v1469 = vpop.f32.mrf.mxu0
      %1470 = vdwg.mxu0
      %v1471 = vld [vmem:[%s10] sm:$0x1]
      %v1473 = vlaneseq
      %v1474 = vshrl.u32 %v1473, 7
      %v1475 = vsub.s32 0, %v1474
      %v1476 = vrot.slane %v1471, %v1475
      %v1478 = vmul.f32 %v1393, %v1476
      %v1479 = vmul.f32 %v1398, %v1476
      %v1480 = vmul.f32 %v1403, %v1476
      %v1481 = vmul.f32 %v1408, %v1476
      %v1482 = vmul.f32 %v1413, %v1476
      %v1483 = vmul.f32 %v1418, %v1476
      %v1484 = vmul.f32 %v1423, %v1476
      %v1485 = vmul.f32 %v1428, %v1476
      %v1486 = vmul.f32 %v1433, %v1476
      %v1487 = vmul.f32 %v1438, %v1476
      %v1488 = vmul.f32 %v1443, %v1476
      %v1489 = vmul.f32 %v1448, %v1476
      %v1490 = vmul.f32 %v1453, %v1476
      %v1491 = vmul.f32 %v1458, %v1476
      %v1492 = vmul.f32 %v1463, %v1476
      %v1493 = vmul.f32 %v1468, %v1476
      %v1494 = vld [vmem:[%s11] sm:$0x1]
      %v1496 = vlaneseq
      %v1497 = vshrl.u32 %v1496, 7
      %v1498 = vsub.s32 0, %v1497
      %v1499 = vrot.slane %v1494, %v1498
      %v1501 = vadd.f32 %v1478, %v1499
      %v1502 = vadd.f32 %v1479, %v1499
      %v1503 = vadd.f32 %v1480, %v1499
      %v1504 = vadd.f32 %v1481, %v1499
      %v1505 = vadd.f32 %v1482, %v1499
      %v1506 = vadd.f32 %v1483, %v1499
      %v1507 = vadd.f32 %v1484, %v1499
      %v1508 = vadd.f32 %v1485, %v1499
      %v1509 = vadd.f32 %v1486, %v1499
      %v1510 = vadd.f32 %v1487, %v1499
      %v1511 = vadd.f32 %v1488, %v1499
      %v1512 = vadd.f32 %v1489, %v1499
      %v1513 = vadd.f32 %v1490, %v1499
      %v1514 = vadd.f32 %v1491, %v1499
      %v1515 = vadd.f32 %v1492, %v1499
      %v1516 = vadd.f32 %v1493, %v1499
      %v1517 = vadd.f32 %v1501, %v943
      %v1518 = vadd.f32 %v1502, %v944
      %v1519 = vadd.f32 %v1503, %v945
      %v1520 = vadd.f32 %v1504, %v946
      %v1521 = vadd.f32 %v1505, %v947
      %v1522 = vadd.f32 %v1506, %v948
      %v1523 = vadd.f32 %v1507, %v949
      %v1524 = vadd.f32 %v1508, %v950
      %v1525 = vadd.f32 %v1509, %v951
      %v1526 = vadd.f32 %v1510, %v952
      %v1527 = vadd.f32 %v1511, %v953
      %v1528 = vadd.f32 %v1512, %v954
      %v1529 = vadd.f32 %v1513, %v955
      %v1530 = vadd.f32 %v1514, %v956
      %v1531 = vadd.f32 %v1515, %v957
      %v1532 = vadd.f32 %v1516, %v958
      %v1533 = vmul.f32 %v1517, 0.5
      %v1534 = vmul.f32 %v1518, 0.5
      %v1535 = vmul.f32 %v1519, 0.5
      %v1536 = vmul.f32 %v1520, 0.5
      %v1537 = vmul.f32 %v1521, 0.5
      %v1538 = vmul.f32 %v1522, 0.5
      %v1539 = vmul.f32 %v1523, 0.5
      %v1540 = vmul.f32 %v1524, 0.5
      %v1541 = vmul.f32 %v1525, 0.5
      %v1542 = vmul.f32 %v1526, 0.5
      %v1543 = vmul.f32 %v1527, 0.5
      %v1544 = vmul.f32 %v1528, 0.5
      %v1545 = vmul.f32 %v1529, 0.5
      %v1546 = vmul.f32 %v1530, 0.5
      %v1547 = vmul.f32 %v1531, 0.5
      %v1548 = vmul.f32 %v1532, 0.5
      %v1549 = vmul.f32 %v1517, %v1517
      %v1550 = vmul.f32 %v1518, %v1518
      %v1551 = vmul.f32 %v1519, %v1519
      %v1552 = vmul.f32 %v1520, %v1520
      %v1553 = vmul.f32 %v1521, %v1521
      %v1554 = vmul.f32 %v1522, %v1522
      %v1555 = vmul.f32 %v1523, %v1523
      %v1556 = vmul.f32 %v1524, %v1524
      %v1557 = vmul.f32 %v1525, %v1525
      %v1558 = vmul.f32 %v1526, %v1526
      %v1559 = vmul.f32 %v1527, %v1527
      %v1560 = vmul.f32 %v1528, %v1528
      %v1561 = vmul.f32 %v1529, %v1529
      %v1562 = vmul.f32 %v1530, %v1530
      %v1563 = vmul.f32 %v1531, %v1531
      %v1564 = vmul.f32 %v1532, %v1532
      %v1565 = vmul.f32 %v1549, %v1517
      %v1566 = vmul.f32 %v1550, %v1518
      %v1567 = vmul.f32 %v1551, %v1519
      %v1568 = vmul.f32 %v1552, %v1520
      %v1569 = vmul.f32 %v1553, %v1521
      %v1570 = vmul.f32 %v1554, %v1522
      %v1571 = vmul.f32 %v1555, %v1523
      %v1572 = vmul.f32 %v1556, %v1524
      %v1573 = vmul.f32 %v1557, %v1525
      %v1574 = vmul.f32 %v1558, %v1526
      %v1575 = vmul.f32 %v1559, %v1527
      %v1576 = vmul.f32 %v1560, %v1528
      %v1577 = vmul.f32 %v1561, %v1529
      %v1578 = vmul.f32 %v1562, %v1530
      %v1579 = vmul.f32 %v1563, %v1531
      %v1580 = vmul.f32 %v1564, %v1532
      %v1581 = vmul.f32 %v1565, 0.044715
      %v1582 = vmul.f32 %v1566, 0.044715
      %v1583 = vmul.f32 %v1567, 0.044715
      %v1584 = vmul.f32 %v1568, 0.044715
      %v1585 = vmul.f32 %v1569, 0.044715
      %v1586 = vmul.f32 %v1570, 0.044715
      %v1587 = vmul.f32 %v1571, 0.044715
      %v1588 = vmul.f32 %v1572, 0.044715
      %v1589 = vmul.f32 %v1573, 0.044715
      %v1590 = vmul.f32 %v1574, 0.044715
      %v1591 = vmul.f32 %v1575, 0.044715
      %v1592 = vmul.f32 %v1576, 0.044715
      %v1593 = vmul.f32 %v1577, 0.044715
      %v1594 = vmul.f32 %v1578, 0.044715
      %v1595 = vmul.f32 %v1579, 0.044715
      %v1596 = vmul.f32 %v1580, 0.044715
      %v1597 = vadd.f32 %v1517, %v1581
      %v1598 = vadd.f32 %v1518, %v1582
      %v1599 = vadd.f32 %v1519, %v1583
      %v1600 = vadd.f32 %v1520, %v1584
      %v1601 = vadd.f32 %v1521, %v1585
      %v1602 = vadd.f32 %v1522, %v1586
      %v1603 = vadd.f32 %v1523, %v1587
      %v1604 = vadd.f32 %v1524, %v1588
      %v1605 = vadd.f32 %v1525, %v1589
      %v1606 = vadd.f32 %v1526, %v1590
      %v1607 = vadd.f32 %v1527, %v1591
      %v1608 = vadd.f32 %v1528, %v1592
      %v1609 = vadd.f32 %v1529, %v1593
      %v1610 = vadd.f32 %v1530, %v1594
      %v1611 = vadd.f32 %v1531, %v1595
      %v1612 = vadd.f32 %v1532, %v1596
      %v1613 = vmul.f32 %v1597, 0.7978846
      %v1614 = vmul.f32 %v1598, 0.7978846
      %v1615 = vmul.f32 %v1599, 0.7978846
      %v1616 = vmul.f32 %v1600, 0.7978846
      %v1617 = vmul.f32 %v1601, 0.7978846
      %v1618 = vmul.f32 %v1602, 0.7978846
      %v1619 = vmul.f32 %v1603, 0.7978846
      %v1620 = vmul.f32 %v1604, 0.7978846
      %v1621 = vmul.f32 %v1605, 0.7978846
      %v1622 = vmul.f32 %v1606, 0.7978846
      %v1623 = vmul.f32 %v1607, 0.7978846
      %v1624 = vmul.f32 %v1608, 0.7978846
      %v1625 = vmul.f32 %v1609, 0.7978846
      %v1626 = vmul.f32 %v1610, 0.7978846
      %v1627 = vmul.f32 %v1611, 0.7978846
      %v1628 = vmul.f32 %v1612, 0.7978846
      %v1629 = vtanh.pop %v1613
      %v1630 = vtanh.pop %v1614
      %v1631 = vtanh.pop %v1615
      %v1632 = vtanh.pop %v1616
      %v1633 = vtanh.pop %v1617
      %v1634 = vtanh.pop %v1618
      %v1635 = vtanh.pop %v1619
      %v1636 = vtanh.pop %v1620
      %v1637 = vtanh.pop %v1621
      %v1638 = vtanh.pop %v1622
      %v1639 = vtanh.pop %v1623
      %v1640 = vtanh.pop %v1624
      %v1641 = vtanh.pop %v1625
      %v1642 = vtanh.pop %v1626
      %v1643 = vtanh.pop %v1627
      %v1644 = vtanh.pop %v1628
      %v1645 = vadd.f32 %v1629, 1.0
      %v1646 = vadd.f32 %v1630, 1.0
      %v1647 = vadd.f32 %v1631, 1.0
      %v1648 = vadd.f32 %v1632, 1.0
      %v1649 = vadd.f32 %v1633, 1.0
      %v1650 = vadd.f32 %v1634, 1.0
      %v1651 = vadd.f32 %v1635, 1.0
      %v1652 = vadd.f32 %v1636, 1.0
      %v1653 = vadd.f32 %v1637, 1.0
      %v1654 = vadd.f32 %v1638, 1.0
      %v1655 = vadd.f32 %v1639, 1.0
      %v1656 = vadd.f32 %v1640, 1.0
      %v1657 = vadd.f32 %v1641, 1.0
      %v1658 = vadd.f32 %v1642, 1.0
      %v1659 = vadd.f32 %v1643, 1.0
      %v1660 = vadd.f32 %v1644, 1.0
      %v1661 = vmul.f32 %v1533, %v1645
      %v1662 = vmul.f32 %v1534, %v1646
      %v1663 = vmul.f32 %v1535, %v1647
      %v1664 = vmul.f32 %v1536, %v1648
      %v1665 = vmul.f32 %v1537, %v1649
      %v1666 = vmul.f32 %v1538, %v1650
      %v1667 = vmul.f32 %v1539, %v1651
      %v1668 = vmul.f32 %v1540, %v1652
      %v1669 = vmul.f32 %v1541, %v1653
      %v1670 = vmul.f32 %v1542, %v1654
      %v1671 = vmul.f32 %v1543, %v1655
      %v1672 = vmul.f32 %v1544, %v1656
      %v1673 = vmul.f32 %v1545, %v1657
      %v1674 = vmul.f32 %v1546, %v1658
      %v1675 = vmul.f32 %v1547, %v1659
      %v1676 = vmul.f32 %v1548, %v1660
      %s1677 = scalar_lea.vmem %s6, 128
      %v1678 = vld [vmem:[%s1677] sm:$0xff]
      %v1679 = vld [vmem:[%s1677 + $0x8] sm:$0xff]
      %v1680 = vld [vmem:[%s1677 + $0x10] sm:$0xff]
      %v1681 = vld [vmem:[%s1677 + $0x18] sm:$0xff]
      %v1682 = vld [vmem:[%s1677 + $0x20] sm:$0xff]
      %v1683 = vld [vmem:[%s1677 + $0x28] sm:$0xff]
      %v1684 = vld [vmem:[%s1677 + $0x30] sm:$0xff]
      %v1685 = vld [vmem:[%s1677 + $0x38] sm:$0xff]
      %v1686 = vld [vmem:[%s1677 + $0x40] sm:$0xff]
      %v1687 = vld [vmem:[%s1677 + $0x48] sm:$0xff]
      %v1688 = vld [vmem:[%s1677 + $0x50] sm:$0xff]
      %v1689 = vld [vmem:[%s1677 + $0x58] sm:$0xff]
      %v1690 = vld [vmem:[%s1677 + $0x60] sm:$0xff]
      %v1691 = vld [vmem:[%s1677 + $0x68] sm:$0xff]
      %v1692 = vld [vmem:[%s1677 + $0x70] sm:$0xff]
      %v1693 = vld [vmem:[%s1677 + $0x78] sm:$0xff]
      %1694 = vmatprep.subr.mxu0 0.0
      %1695 = vmatpush1.msra.mxu0 %v1693
      %1696 = vmatprep.subr.mxu0 0.0
      %1697 = vmatpush1.msra.mxu0 %v1692
      %1698 = vmatprep.subr.mxu0 0.0
      %1699 = vmatpush1.msra.mxu0 %v1691
      %1700 = vmatprep.subr.mxu0 0.0
      %1701 = vmatpush1.msra.mxu0 %v1690
      %1702 = vmatprep.subr.mxu0 0.0
      %1703 = vmatpush1.msra.mxu0 %v1689
      %1704 = vmatprep.subr.mxu0 0.0
      %1705 = vmatpush1.msra.mxu0 %v1688
      %1706 = vmatprep.subr.mxu0 0.0
      %1707 = vmatpush1.msra.mxu0 %v1687
      %1708 = vmatprep.subr.mxu0 0.0
      %1709 = vmatpush1.msra.mxu0 %v1686
      %1710 = vmatprep.subr.mxu0 0.0
      %1711 = vmatpush1.msra.mxu0 %v1685
      %1712 = vmatprep.subr.mxu0 0.0
      %1713 = vmatpush1.msra.mxu0 %v1684
      %1714 = vmatprep.subr.mxu0 0.0
      %1715 = vmatpush1.msra.mxu0 %v1683
      %1716 = vmatprep.subr.mxu0 0.0
      %1717 = vmatpush1.msra.mxu0 %v1682
      %1718 = vmatprep.subr.mxu0 0.0
      %1719 = vmatpush1.msra.mxu0 %v1681
      %1720 = vmatprep.subr.mxu0 0.0
      %1721 = vmatpush1.msra.mxu0 %v1680
      %1722 = vmatprep.subr.mxu0 0.0
      %1723 = vmatpush1.msra.mxu0 %v1679
      %1724 = vmatprep.subr.mxu0 0.0
      %1725 = vmatpush1.msra.mxu0 %v1678
      %1726 = vmatprep.subr.mxu0 0.0
      %1727 = vmatpush2.msra.mxu0 0.0
      %1728 = vmatprep.subr.mxu0 0.0
      %1729 = vmatpush2.msra.mxu0 0.0
      %1730 = vmatprep.subr.mxu0 0.0
      %1731 = vmatpush2.msra.mxu0 0.0
      %1732 = vmatprep.subr.mxu0 0.0
      %1733 = vmatpush2.msra.mxu0 0.0
      %1734 = vmatprep.subr.mxu0 0.0
      %1735 = vmatpush2.msra.mxu0 0.0
      %1736 = vmatprep.subr.mxu0 0.0
      %1737 = vmatpush2.msra.mxu0 0.0
      %1738 = vmatprep.subr.mxu0 0.0
      %1739 = vmatpush2.msra.mxu0 0.0
      %1740 = vmatprep.subr.mxu0 0.0
      %1741 = vmatpush2.msra.mxu0 0.0
      %1742 = vmatprep.subr.mxu0 0.0
      %1743 = vmatpush2.msra.mxu0 0.0
      %1744 = vmatprep.subr.mxu0 0.0
      %1745 = vmatpush2.msra.mxu0 0.0
      %1746 = vmatprep.subr.mxu0 0.0
      %1747 = vmatpush2.msra.mxu0 0.0
      %1748 = vmatprep.subr.mxu0 0.0
      %1749 = vmatpush2.msra.mxu0 0.0
      %1750 = vmatprep.subr.mxu0 0.0
      %1751 = vmatpush2.msra.mxu0 0.0
      %1752 = vmatprep.subr.mxu0 0.0
      %1753 = vmatpush2.msra.mxu0 0.0
      %1754 = vmatprep.subr.mxu0 0.0
      %1755 = vmatpush2.msra.mxu0 0.0
      %1756 = vmatprep.subr.mxu0 0.0
      %1757 = vmatpush2.msra.mxu0 0.0
      %1758 = vmatprep.mubr.f32.mxu0 0.0
      %1759 = vmatmul.mubr.f32.gmra.mxu0 %v1661
      %v1760 = vpop.f32.mrf.mxu0
      %v1761 = vadd.f32 0.0, %v1760
      %v1762 = vpop.f32.mrf.mxu0
      %1763 = vmatprep.mubr.f32.mxu0 0.0
      %1764 = vmatmul.mubr.f32.gmra.mxu0 %v1662
      %v1765 = vpop.f32.mrf.mxu0
      %v1766 = vadd.f32 0.0, %v1765
      %v1767 = vpop.f32.mrf.mxu0
      %1768 = vmatprep.mubr.f32.mxu0 0.0
      %1769 = vmatmul.mubr.f32.gmra.mxu0 %v1663
      %v1770 = vpop.f32.mrf.mxu0
      %v1771 = vadd.f32 0.0, %v1770
      %v1772 = vpop.f32.mrf.mxu0
      %1773 = vmatprep.mubr.f32.mxu0 0.0
      %1774 = vmatmul.mubr.f32.gmra.mxu0 %v1664
      %v1775 = vpop.f32.mrf.mxu0
      %v1776 = vadd.f32 0.0, %v1775
      %v1777 = vpop.f32.mrf.mxu0
      %1778 = vmatprep.mubr.f32.mxu0 0.0
      %1779 = vmatmul.mubr.f32.gmra.mxu0 %v1665
      %v1780 = vpop.f32.mrf.mxu0
      %v1781 = vadd.f32 0.0, %v1780
      %v1782 = vpop.f32.mrf.mxu0
      %1783 = vmatprep.mubr.f32.mxu0 0.0
      %1784 = vmatmul.mubr.f32.gmra.mxu0 %v1666
      %v1785 = vpop.f32.mrf.mxu0
      %v1786 = vadd.f32 0.0, %v1785
      %v1787 = vpop.f32.mrf.mxu0
      %1788 = vmatprep.mubr.f32.mxu0 0.0
      %1789 = vmatmul.mubr.f32.gmra.mxu0 %v1667
      %v1790 = vpop.f32.mrf.mxu0
      %v1791 = vadd.f32 0.0, %v1790
      %v1792 = vpop.f32.mrf.mxu0
      %1793 = vmatprep.mubr.f32.mxu0 0.0
      %1794 = vmatmul.mubr.f32.gmra.mxu0 %v1668
      %v1795 = vpop.f32.mrf.mxu0
      %v1796 = vadd.f32 0.0, %v1795
      %v1797 = vpop.f32.mrf.mxu0
      %1798 = vmatprep.mubr.f32.mxu0 0.0
      %1799 = vmatmul.mubr.f32.gmra.mxu0 %v1669
      %v1800 = vpop.f32.mrf.mxu0
      %v1801 = vadd.f32 0.0, %v1800
      %v1802 = vpop.f32.mrf.mxu0
      %1803 = vmatprep.mubr.f32.mxu0 0.0
      %1804 = vmatmul.mubr.f32.gmra.mxu0 %v1670
      %v1805 = vpop.f32.mrf.mxu0
      %v1806 = vadd.f32 0.0, %v1805
      %v1807 = vpop.f32.mrf.mxu0
      %1808 = vmatprep.mubr.f32.mxu0 0.0
      %1809 = vmatmul.mubr.f32.gmra.mxu0 %v1671
      %v1810 = vpop.f32.mrf.mxu0
      %v1811 = vadd.f32 0.0, %v1810
      %v1812 = vpop.f32.mrf.mxu0
      %1813 = vmatprep.mubr.f32.mxu0 0.0
      %1814 = vmatmul.mubr.f32.gmra.mxu0 %v1672
      %v1815 = vpop.f32.mrf.mxu0
      %v1816 = vadd.f32 0.0, %v1815
      %v1817 = vpop.f32.mrf.mxu0
      %1818 = vmatprep.mubr.f32.mxu0 0.0
      %1819 = vmatmul.mubr.f32.gmra.mxu0 %v1673
      %v1820 = vpop.f32.mrf.mxu0
      %v1821 = vadd.f32 0.0, %v1820
      %v1822 = vpop.f32.mrf.mxu0
      %1823 = vmatprep.mubr.f32.mxu0 0.0
      %1824 = vmatmul.mubr.f32.gmra.mxu0 %v1674
      %v1825 = vpop.f32.mrf.mxu0
      %v1826 = vadd.f32 0.0, %v1825
      %v1827 = vpop.f32.mrf.mxu0
      %1828 = vmatprep.mubr.f32.mxu0 0.0
      %1829 = vmatmul.mubr.f32.gmra.mxu0 %v1675
      %v1830 = vpop.f32.mrf.mxu0
      %v1831 = vadd.f32 0.0, %v1830
      %v1832 = vpop.f32.mrf.mxu0
      %1833 = vmatprep.mubr.f32.mxu0 0.0
      %1834 = vmatmul.mubr.f32.gmra.mxu0 %v1676
      %v1835 = vpop.f32.mrf.mxu0
      %v1836 = vadd.f32 0.0, %v1835
      %v1837 = vpop.f32.mrf.mxu0
      %1838 = vdwg.mxu0
      %s1839 = scalar_lea.vmem %s7, 1
      %v1840 = vld [vmem:[%s1839] sm:$0x1]
      %v1842 = vlaneseq
      %v1843 = vshrl.u32 %v1842, 7
      %v1844 = vsub.s32 0, %v1843
      %v1845 = vrot.slane %v1840, %v1844
      %v1847 = vmul.f32 %v1761, %v1845
      %v1848 = vmul.f32 %v1766, %v1845
      %v1849 = vmul.f32 %v1771, %v1845
      %v1850 = vmul.f32 %v1776, %v1845
      %v1851 = vmul.f32 %v1781, %v1845
      %v1852 = vmul.f32 %v1786, %v1845
      %v1853 = vmul.f32 %v1791, %v1845
      %v1854 = vmul.f32 %v1796, %v1845
      %v1855 = vmul.f32 %v1801, %v1845
      %v1856 = vmul.f32 %v1806, %v1845
      %v1857 = vmul.f32 %v1811, %v1845
      %v1858 = vmul.f32 %v1816, %v1845
      %v1859 = vmul.f32 %v1821, %v1845
      %v1860 = vmul.f32 %v1826, %v1845
      %v1861 = vmul.f32 %v1831, %v1845
      %v1862 = vmul.f32 %v1836, %v1845
      %s1863 = scalar_lea.vmem %s8, 1
      %v1864 = vld [vmem:[%s1863] sm:$0x1]
      %v1866 = vlaneseq
      %v1867 = vshrl.u32 %v1866, 7
      %v1868 = vsub.s32 0, %v1867
      %v1869 = vrot.slane %v1864, %v1868
      %v1871 = vadd.f32 %v1847, %v1869
      %v1872 = vadd.f32 %v1848, %v1869
      %v1873 = vadd.f32 %v1849, %v1869
      %v1874 = vadd.f32 %v1850, %v1869
      %v1875 = vadd.f32 %v1851, %v1869
      %v1876 = vadd.f32 %v1852, %v1869
      %v1877 = vadd.f32 %v1853, %v1869
      %v1878 = vadd.f32 %v1854, %v1869
      %v1879 = vadd.f32 %v1855, %v1869
      %v1880 = vadd.f32 %v1856, %v1869
      %v1881 = vadd.f32 %v1857, %v1869
      %v1882 = vadd.f32 %v1858, %v1869
      %v1883 = vadd.f32 %v1859, %v1869
      %v1884 = vadd.f32 %v1860, %v1869
      %v1885 = vadd.f32 %v1861, %v1869
      %v1886 = vadd.f32 %v1862, %v1869
      %v1887 = vmul.f32 %v1871, 0.5
      %v1888 = vmul.f32 %v1872, 0.5
      %v1889 = vmul.f32 %v1873, 0.5
      %v1890 = vmul.f32 %v1874, 0.5
      %v1891 = vmul.f32 %v1875, 0.5
      %v1892 = vmul.f32 %v1876, 0.5
      %v1893 = vmul.f32 %v1877, 0.5
      %v1894 = vmul.f32 %v1878, 0.5
      %v1895 = vmul.f32 %v1879, 0.5
      %v1896 = vmul.f32 %v1880, 0.5
      %v1897 = vmul.f32 %v1881, 0.5
      %v1898 = vmul.f32 %v1882, 0.5
      %v1899 = vmul.f32 %v1883, 0.5
      %v1900 = vmul.f32 %v1884, 0.5
      %v1901 = vmul.f32 %v1885, 0.5
      %v1902 = vmul.f32 %v1886, 0.5
      %v1903 = vmul.f32 %v1871, %v1871
      %v1904 = vmul.f32 %v1872, %v1872
      %v1905 = vmul.f32 %v1873, %v1873
      %v1906 = vmul.f32 %v1874, %v1874
      %v1907 = vmul.f32 %v1875, %v1875
      %v1908 = vmul.f32 %v1876, %v1876
      %v1909 = vmul.f32 %v1877, %v1877
      %v1910 = vmul.f32 %v1878, %v1878
      %v1911 = vmul.f32 %v1879, %v1879
      %v1912 = vmul.f32 %v1880, %v1880
      %v1913 = vmul.f32 %v1881, %v1881
      %v1914 = vmul.f32 %v1882, %v1882
      %v1915 = vmul.f32 %v1883, %v1883
      %v1916 = vmul.f32 %v1884, %v1884
      %v1917 = vmul.f32 %v1885, %v1885
      %v1918 = vmul.f32 %v1886, %v1886
      %v1919 = vmul.f32 %v1903, %v1871
      %v1920 = vmul.f32 %v1904, %v1872
      %v1921 = vmul.f32 %v1905, %v1873
      %v1922 = vmul.f32 %v1906, %v1874
      %v1923 = vmul.f32 %v1907, %v1875
      %v1924 = vmul.f32 %v1908, %v1876
      %v1925 = vmul.f32 %v1909, %v1877
      %v1926 = vmul.f32 %v1910, %v1878
      %v1927 = vmul.f32 %v1911, %v1879
      %v1928 = vmul.f32 %v1912, %v1880
      %v1929 = vmul.f32 %v1913, %v1881
      %v1930 = vmul.f32 %v1914, %v1882
      %v1931 = vmul.f32 %v1915, %v1883
      %v1932 = vmul.f32 %v1916, %v1884
      %v1933 = vmul.f32 %v1917, %v1885
      %v1934 = vmul.f32 %v1918, %v1886
      %v1935 = vmul.f32 %v1919, 0.044715
      %v1936 = vmul.f32 %v1920, 0.044715
      %v1937 = vmul.f32 %v1921, 0.044715
      %v1938 = vmul.f32 %v1922, 0.044715
      %v1939 = vmul.f32 %v1923, 0.044715
      %v1940 = vmul.f32 %v1924, 0.044715
      %v1941 = vmul.f32 %v1925, 0.044715
      %v1942 = vmul.f32 %v1926, 0.044715
      %v1943 = vmul.f32 %v1927, 0.044715
      %v1944 = vmul.f32 %v1928, 0.044715
      %v1945 = vmul.f32 %v1929, 0.044715
      %v1946 = vmul.f32 %v1930, 0.044715
      %v1947 = vmul.f32 %v1931, 0.044715
      %v1948 = vmul.f32 %v1932, 0.044715
      %v1949 = vmul.f32 %v1933, 0.044715
      %v1950 = vmul.f32 %v1934, 0.044715
      %v1951 = vadd.f32 %v1871, %v1935
      %v1952 = vadd.f32 %v1872, %v1936
      %v1953 = vadd.f32 %v1873, %v1937
      %v1954 = vadd.f32 %v1874, %v1938
      %v1955 = vadd.f32 %v1875, %v1939
      %v1956 = vadd.f32 %v1876, %v1940
      %v1957 = vadd.f32 %v1877, %v1941
      %v1958 = vadd.f32 %v1878, %v1942
      %v1959 = vadd.f32 %v1879, %v1943
      %v1960 = vadd.f32 %v1880, %v1944
      %v1961 = vadd.f32 %v1881, %v1945
      %v1962 = vadd.f32 %v1882, %v1946
      %v1963 = vadd.f32 %v1883, %v1947
      %v1964 = vadd.f32 %v1884, %v1948
      %v1965 = vadd.f32 %v1885, %v1949
      %v1966 = vadd.f32 %v1886, %v1950
      %v1967 = vmul.f32 %v1951, 0.7978846
      %v1968 = vmul.f32 %v1952, 0.7978846
      %v1969 = vmul.f32 %v1953, 0.7978846
      %v1970 = vmul.f32 %v1954, 0.7978846
      %v1971 = vmul.f32 %v1955, 0.7978846
      %v1972 = vmul.f32 %v1956, 0.7978846
      %v1973 = vmul.f32 %v1957, 0.7978846
      %v1974 = vmul.f32 %v1958, 0.7978846
      %v1975 = vmul.f32 %v1959, 0.7978846
      %v1976 = vmul.f32 %v1960, 0.7978846
      %v1977 = vmul.f32 %v1961, 0.7978846
      %v1978 = vmul.f32 %v1962, 0.7978846
      %v1979 = vmul.f32 %v1963, 0.7978846
      %v1980 = vmul.f32 %v1964, 0.7978846
      %v1981 = vmul.f32 %v1965, 0.7978846
      %v1982 = vmul.f32 %v1966, 0.7978846
      %v1983 = vtanh.pop %v1967
      %v1984 = vtanh.pop %v1968
      %v1985 = vtanh.pop %v1969
      %v1986 = vtanh.pop %v1970
      %v1987 = vtanh.pop %v1971
      %v1988 = vtanh.pop %v1972
      %v1989 = vtanh.pop %v1973
      %v1990 = vtanh.pop %v1974
      %v1991 = vtanh.pop %v1975
      %v1992 = vtanh.pop %v1976
      %v1993 = vtanh.pop %v1977
      %v1994 = vtanh.pop %v1978
      %v1995 = vtanh.pop %v1979
      %v1996 = vtanh.pop %v1980
      %v1997 = vtanh.pop %v1981
      %v1998 = vtanh.pop %v1982
      %v1999 = vadd.f32 %v1983, 1.0
      %v2000 = vadd.f32 %v1984, 1.0
      %v2001 = vadd.f32 %v1985, 1.0
      %v2002 = vadd.f32 %v1986, 1.0
      %v2003 = vadd.f32 %v1987, 1.0
      %v2004 = vadd.f32 %v1988, 1.0
      %v2005 = vadd.f32 %v1989, 1.0
      %v2006 = vadd.f32 %v1990, 1.0
      %v2007 = vadd.f32 %v1991, 1.0
      %v2008 = vadd.f32 %v1992, 1.0
      %v2009 = vadd.f32 %v1993, 1.0
      %v2010 = vadd.f32 %v1994, 1.0
      %v2011 = vadd.f32 %v1995, 1.0
      %v2012 = vadd.f32 %v1996, 1.0
      %v2013 = vadd.f32 %v1997, 1.0
      %v2014 = vadd.f32 %v1998, 1.0
      %v2015 = vmul.f32 %v1887, %v1999
      %v2016 = vmul.f32 %v1888, %v2000
      %v2017 = vmul.f32 %v1889, %v2001
      %v2018 = vmul.f32 %v1890, %v2002
      %v2019 = vmul.f32 %v1891, %v2003
      %v2020 = vmul.f32 %v1892, %v2004
      %v2021 = vmul.f32 %v1893, %v2005
      %v2022 = vmul.f32 %v1894, %v2006
      %v2023 = vmul.f32 %v1895, %v2007
      %v2024 = vmul.f32 %v1896, %v2008
      %v2025 = vmul.f32 %v1897, %v2009
      %v2026 = vmul.f32 %v1898, %v2010
      %v2027 = vmul.f32 %v1899, %v2011
      %v2028 = vmul.f32 %v1900, %v2012
      %v2029 = vmul.f32 %v1901, %v2013
      %v2030 = vmul.f32 %v1902, %v2014
      %s2031 = scalar_lea.vmem %s9, 128
      %v2032 = vld [vmem:[%s2031] sm:$0xff]
      %v2033 = vld [vmem:[%s2031 + $0x8] sm:$0xff]
      %v2034 = vld [vmem:[%s2031 + $0x10] sm:$0xff]
      %v2035 = vld [vmem:[%s2031 + $0x18] sm:$0xff]
      %v2036 = vld [vmem:[%s2031 + $0x20] sm:$0xff]
      %v2037 = vld [vmem:[%s2031 + $0x28] sm:$0xff]
      %v2038 = vld [vmem:[%s2031 + $0x30] sm:$0xff]
      %v2039 = vld [vmem:[%s2031 + $0x38] sm:$0xff]
      %v2040 = vld [vmem:[%s2031 + $0x40] sm:$0xff]
      %v2041 = vld [vmem:[%s2031 + $0x48] sm:$0xff]
      %v2042 = vld [vmem:[%s2031 + $0x50] sm:$0xff]
      %v2043 = vld [vmem:[%s2031 + $0x58] sm:$0xff]
      %v2044 = vld [vmem:[%s2031 + $0x60] sm:$0xff]
      %v2045 = vld [vmem:[%s2031 + $0x68] sm:$0xff]
      %v2046 = vld [vmem:[%s2031 + $0x70] sm:$0xff]
      %v2047 = vld [vmem:[%s2031 + $0x78] sm:$0xff]
      %2048 = vmatprep.subr.mxu0 0.0
      %2049 = vmatpush1.msra.mxu0 %v2047
      %2050 = vmatprep.subr.mxu0 0.0
      %2051 = vmatpush1.msra.mxu0 %v2046
      %2052 = vmatprep.subr.mxu0 0.0
      %2053 = vmatpush1.msra.mxu0 %v2045
      %2054 = vmatprep.subr.mxu0 0.0
      %2055 = vmatpush1.msra.mxu0 %v2044
      %2056 = vmatprep.subr.mxu0 0.0
      %2057 = vmatpush1.msra.mxu0 %v2043
      %2058 = vmatprep.subr.mxu0 0.0
      %2059 = vmatpush1.msra.mxu0 %v2042
      %2060 = vmatprep.subr.mxu0 0.0
      %2061 = vmatpush1.msra.mxu0 %v2041
      %2062 = vmatprep.subr.mxu0 0.0
      %2063 = vmatpush1.msra.mxu0 %v2040
      %2064 = vmatprep.subr.mxu0 0.0
      %2065 = vmatpush1.msra.mxu0 %v2039
      %2066 = vmatprep.subr.mxu0 0.0
      %2067 = vmatpush1.msra.mxu0 %v2038
      %2068 = vmatprep.subr.mxu0 0.0
      %2069 = vmatpush1.msra.mxu0 %v2037
      %2070 = vmatprep.subr.mxu0 0.0
      %2071 = vmatpush1.msra.mxu0 %v2036
      %2072 = vmatprep.subr.mxu0 0.0
      %2073 = vmatpush1.msra.mxu0 %v2035
      %2074 = vmatprep.subr.mxu0 0.0
      %2075 = vmatpush1.msra.mxu0 %v2034
      %2076 = vmatprep.subr.mxu0 0.0
      %2077 = vmatpush1.msra.mxu0 %v2033
      %2078 = vmatprep.subr.mxu0 0.0
      %2079 = vmatpush1.msra.mxu0 %v2032
      %2080 = vmatprep.subr.mxu0 0.0
      %2081 = vmatpush2.msra.mxu0 0.0
      %2082 = vmatprep.subr.mxu0 0.0
      %2083 = vmatpush2.msra.mxu0 0.0
      %2084 = vmatprep.subr.mxu0 0.0
      %2085 = vmatpush2.msra.mxu0 0.0
      %2086 = vmatprep.subr.mxu0 0.0
      %2087 = vmatpush2.msra.mxu0 0.0
      %2088 = vmatprep.subr.mxu0 0.0
      %2089 = vmatpush2.msra.mxu0 0.0
      %2090 = vmatprep.subr.mxu0 0.0
      %2091 = vmatpush2.msra.mxu0 0.0
      %2092 = vmatprep.subr.mxu0 0.0
      %2093 = vmatpush2.msra.mxu0 0.0
      %2094 = vmatprep.subr.mxu0 0.0
      %2095 = vmatpush2.msra.mxu0 0.0
      %2096 = vmatprep.subr.mxu0 0.0
      %2097 = vmatpush2.msra.mxu0 0.0
      %2098 = vmatprep.subr.mxu0 0.0
      %2099 = vmatpush2.msra.mxu0 0.0
      %2100 = vmatprep.subr.mxu0 0.0
      %2101 = vmatpush2.msra.mxu0 0.0
      %2102 = vmatprep.subr.mxu0 0.0
      %2103 = vmatpush2.msra.mxu0 0.0
      %2104 = vmatprep.subr.mxu0 0.0
      %2105 = vmatpush2.msra.mxu0 0.0
      %2106 = vmatprep.subr.mxu0 0.0
      %2107 = vmatpush2.msra.mxu0 0.0
      %2108 = vmatprep.subr.mxu0 0.0
      %2109 = vmatpush2.msra.mxu0 0.0
      %2110 = vmatprep.subr.mxu0 0.0
      %2111 = vmatpush2.msra.mxu0 0.0
      %2112 = vmatprep.mubr.f32.mxu0 0.0
      %2113 = vmatmul.mubr.f32.gmra.mxu0 %v2015
      %v2114 = vpop.f32.mrf.mxu0
      %v2115 = vadd.f32 0.0, %v2114
      %v2116 = vpop.f32.mrf.mxu0
      %2117 = vmatprep.mubr.f32.mxu0 0.0
      %2118 = vmatmul.mubr.f32.gmra.mxu0 %v2016
      %v2119 = vpop.f32.mrf.mxu0
      %v2120 = vadd.f32 0.0, %v2119
      %v2121 = vpop.f32.mrf.mxu0
      %2122 = vmatprep.mubr.f32.mxu0 0.0
      %2123 = vmatmul.mubr.f32.gmra.mxu0 %v2017
      %v2124 = vpop.f32.mrf.mxu0
      %v2125 = vadd.f32 0.0, %v2124
      %v2126 = vpop.f32.mrf.mxu0
      %2127 = vmatprep.mubr.f32.mxu0 0.0
      %2128 = vmatmul.mubr.f32.gmra.mxu0 %v2018
      %v2129 = vpop.f32.mrf.mxu0
      %v2130 = vadd.f32 0.0, %v2129
      %v2131 = vpop.f32.mrf.mxu0
      %2132 = vmatprep.mubr.f32.mxu0 0.0
      %2133 = vmatmul.mubr.f32.gmra.mxu0 %v2019
      %v2134 = vpop.f32.mrf.mxu0
      %v2135 = vadd.f32 0.0, %v2134
      %v2136 = vpop.f32.mrf.mxu0
      %2137 = vmatprep.mubr.f32.mxu0 0.0
      %2138 = vmatmul.mubr.f32.gmra.mxu0 %v2020
      %v2139 = vpop.f32.mrf.mxu0
      %v2140 = vadd.f32 0.0, %v2139
      %v2141 = vpop.f32.mrf.mxu0
      %2142 = vmatprep.mubr.f32.mxu0 0.0
      %2143 = vmatmul.mubr.f32.gmra.mxu0 %v2021
      %v2144 = vpop.f32.mrf.mxu0
      %v2145 = vadd.f32 0.0, %v2144
      %v2146 = vpop.f32.mrf.mxu0
      %2147 = vmatprep.mubr.f32.mxu0 0.0
      %2148 = vmatmul.mubr.f32.gmra.mxu0 %v2022
      %v2149 = vpop.f32.mrf.mxu0
      %v2150 = vadd.f32 0.0, %v2149
      %v2151 = vpop.f32.mrf.mxu0
      %2152 = vmatprep.mubr.f32.mxu0 0.0
      %2153 = vmatmul.mubr.f32.gmra.mxu0 %v2023
      %v2154 = vpop.f32.mrf.mxu0
      %v2155 = vadd.f32 0.0, %v2154
      %v2156 = vpop.f32.mrf.mxu0
      %2157 = vmatprep.mubr.f32.mxu0 0.0
      %2158 = vmatmul.mubr.f32.gmra.mxu0 %v2024
      %v2159 = vpop.f32.mrf.mxu0
      %v2160 = vadd.f32 0.0, %v2159
      %v2161 = vpop.f32.mrf.mxu0
      %2162 = vmatprep.mubr.f32.mxu0 0.0
      %2163 = vmatmul.mubr.f32.gmra.mxu0 %v2025
      %v2164 = vpop.f32.mrf.mxu0
      %v2165 = vadd.f32 0.0, %v2164
      %v2166 = vpop.f32.mrf.mxu0
      %2167 = vmatprep.mubr.f32.mxu0 0.0
      %2168 = vmatmul.mubr.f32.gmra.mxu0 %v2026
      %v2169 = vpop.f32.mrf.mxu0
      %v2170 = vadd.f32 0.0, %v2169
      %v2171 = vpop.f32.mrf.mxu0
      %2172 = vmatprep.mubr.f32.mxu0 0.0
      %2173 = vmatmul.mubr.f32.gmra.mxu0 %v2027
      %v2174 = vpop.f32.mrf.mxu0
      %v2175 = vadd.f32 0.0, %v2174
      %v2176 = vpop.f32.mrf.mxu0
      %2177 = vmatprep.mubr.f32.mxu0 0.0
      %2178 = vmatmul.mubr.f32.gmra.mxu0 %v2028
      %v2179 = vpop.f32.mrf.mxu0
      %v2180 = vadd.f32 0.0, %v2179
      %v2181 = vpop.f32.mrf.mxu0
      %2182 = vmatprep.mubr.f32.mxu0 0.0
      %2183 = vmatmul.mubr.f32.gmra.mxu0 %v2029
      %v2184 = vpop.f32.mrf.mxu0
      %v2185 = vadd.f32 0.0, %v2184
      %v2186 = vpop.f32.mrf.mxu0
      %2187 = vmatprep.mubr.f32.mxu0 0.0
      %2188 = vmatmul.mubr.f32.gmra.mxu0 %v2030
      %v2189 = vpop.f32.mrf.mxu0
      %v2190 = vadd.f32 0.0, %v2189
      %v2191 = vpop.f32.mrf.mxu0
      %2192 = vdwg.mxu0
      %s2193 = scalar_lea.vmem %s10, 1
      %v2194 = vld [vmem:[%s2193] sm:$0x1]
      %v2196 = vlaneseq
      %v2197 = vshrl.u32 %v2196, 7
      %v2198 = vsub.s32 0, %v2197
      %v2199 = vrot.slane %v2194, %v2198
      %v2201 = vmul.f32 %v2115, %v2199
      %v2202 = vmul.f32 %v2120, %v2199
      %v2203 = vmul.f32 %v2125, %v2199
      %v2204 = vmul.f32 %v2130, %v2199
      %v2205 = vmul.f32 %v2135, %v2199
      %v2206 = vmul.f32 %v2140, %v2199
      %v2207 = vmul.f32 %v2145, %v2199
      %v2208 = vmul.f32 %v2150, %v2199
      %v2209 = vmul.f32 %v2155, %v2199
      %v2210 = vmul.f32 %v2160, %v2199
      %v2211 = vmul.f32 %v2165, %v2199
      %v2212 = vmul.f32 %v2170, %v2199
      %v2213 = vmul.f32 %v2175, %v2199
      %v2214 = vmul.f32 %v2180, %v2199
      %v2215 = vmul.f32 %v2185, %v2199
      %v2216 = vmul.f32 %v2190, %v2199
      %s2217 = scalar_lea.vmem %s11, 1
      %v2218 = vld [vmem:[%s2217] sm:$0x1]
      %v2220 = vlaneseq
      %v2221 = vshrl.u32 %v2220, 7
      %v2222 = vsub.s32 0, %v2221
      %v2223 = vrot.slane %v2218, %v2222
      %v2225 = vadd.f32 %v2201, %v2223
      %v2226 = vadd.f32 %v2202, %v2223
      %v2227 = vadd.f32 %v2203, %v2223
      %v2228 = vadd.f32 %v2204, %v2223
      %v2229 = vadd.f32 %v2205, %v2223
      %v2230 = vadd.f32 %v2206, %v2223
      %v2231 = vadd.f32 %v2207, %v2223
      %v2232 = vadd.f32 %v2208, %v2223
      %v2233 = vadd.f32 %v2209, %v2223
      %v2234 = vadd.f32 %v2210, %v2223
      %v2235 = vadd.f32 %v2211, %v2223
      %v2236 = vadd.f32 %v2212, %v2223
      %v2237 = vadd.f32 %v2213, %v2223
      %v2238 = vadd.f32 %v2214, %v2223
      %v2239 = vadd.f32 %v2215, %v2223
      %v2240 = vadd.f32 %v2216, %v2223
      %v2241 = vadd.f32 %v2225, %v1661
      %v2242 = vadd.f32 %v2226, %v1662
      %v2243 = vadd.f32 %v2227, %v1663
      %v2244 = vadd.f32 %v2228, %v1664
      %v2245 = vadd.f32 %v2229, %v1665
      %v2246 = vadd.f32 %v2230, %v1666
      %v2247 = vadd.f32 %v2231, %v1667
      %v2248 = vadd.f32 %v2232, %v1668
      %v2249 = vadd.f32 %v2233, %v1669
      %v2250 = vadd.f32 %v2234, %v1670
      %v2251 = vadd.f32 %v2235, %v1671
      %v2252 = vadd.f32 %v2236, %v1672
      %v2253 = vadd.f32 %v2237, %v1673
      %v2254 = vadd.f32 %v2238, %v1674
      %v2255 = vadd.f32 %v2239, %v1675
      %v2256 = vadd.f32 %v2240, %v1676
      %v2257 = vmul.f32 %v2241, 0.5
      %v2258 = vmul.f32 %v2242, 0.5
      %v2259 = vmul.f32 %v2243, 0.5
      %v2260 = vmul.f32 %v2244, 0.5
      %v2261 = vmul.f32 %v2245, 0.5
      %v2262 = vmul.f32 %v2246, 0.5
      %v2263 = vmul.f32 %v2247, 0.5
      %v2264 = vmul.f32 %v2248, 0.5
      %v2265 = vmul.f32 %v2249, 0.5
      %v2266 = vmul.f32 %v2250, 0.5
      %v2267 = vmul.f32 %v2251, 0.5
      %v2268 = vmul.f32 %v2252, 0.5
      %v2269 = vmul.f32 %v2253, 0.5
      %v2270 = vmul.f32 %v2254, 0.5
      %v2271 = vmul.f32 %v2255, 0.5
      %v2272 = vmul.f32 %v2256, 0.5
      %v2273 = vmul.f32 %v2241, %v2241
      %v2274 = vmul.f32 %v2242, %v2242
      %v2275 = vmul.f32 %v2243, %v2243
      %v2276 = vmul.f32 %v2244, %v2244
      %v2277 = vmul.f32 %v2245, %v2245
      %v2278 = vmul.f32 %v2246, %v2246
      %v2279 = vmul.f32 %v2247, %v2247
      %v2280 = vmul.f32 %v2248, %v2248
      %v2281 = vmul.f32 %v2249, %v2249
      %v2282 = vmul.f32 %v2250, %v2250
      %v2283 = vmul.f32 %v2251, %v2251
      %v2284 = vmul.f32 %v2252, %v2252
      %v2285 = vmul.f32 %v2253, %v2253
      %v2286 = vmul.f32 %v2254, %v2254
      %v2287 = vmul.f32 %v2255, %v2255
      %v2288 = vmul.f32 %v2256, %v2256
      %v2289 = vmul.f32 %v2273, %v2241
      %v2290 = vmul.f32 %v2274, %v2242
      %v2291 = vmul.f32 %v2275, %v2243
      %v2292 = vmul.f32 %v2276, %v2244
      %v2293 = vmul.f32 %v2277, %v2245
      %v2294 = vmul.f32 %v2278, %v2246
      %v2295 = vmul.f32 %v2279, %v2247
      %v2296 = vmul.f32 %v2280, %v2248
      %v2297 = vmul.f32 %v2281, %v2249
      %v2298 = vmul.f32 %v2282, %v2250
      %v2299 = vmul.f32 %v2283, %v2251
      %v2300 = vmul.f32 %v2284, %v2252
      %v2301 = vmul.f32 %v2285, %v2253
      %v2302 = vmul.f32 %v2286, %v2254
      %v2303 = vmul.f32 %v2287, %v2255
      %v2304 = vmul.f32 %v2288, %v2256
      %v2305 = vmul.f32 %v2289, 0.044715
      %v2306 = vmul.f32 %v2290, 0.044715
      %v2307 = vmul.f32 %v2291, 0.044715
      %v2308 = vmul.f32 %v2292, 0.044715
      %v2309 = vmul.f32 %v2293, 0.044715
      %v2310 = vmul.f32 %v2294, 0.044715
      %v2311 = vmul.f32 %v2295, 0.044715
      %v2312 = vmul.f32 %v2296, 0.044715
      %v2313 = vmul.f32 %v2297, 0.044715
      %v2314 = vmul.f32 %v2298, 0.044715
      %v2315 = vmul.f32 %v2299, 0.044715
      %v2316 = vmul.f32 %v2300, 0.044715
      %v2317 = vmul.f32 %v2301, 0.044715
      %v2318 = vmul.f32 %v2302, 0.044715
      %v2319 = vmul.f32 %v2303, 0.044715
      %v2320 = vmul.f32 %v2304, 0.044715
      %v2321 = vadd.f32 %v2241, %v2305
      %v2322 = vadd.f32 %v2242, %v2306
      %v2323 = vadd.f32 %v2243, %v2307
      %v2324 = vadd.f32 %v2244, %v2308
      %v2325 = vadd.f32 %v2245, %v2309
      %v2326 = vadd.f32 %v2246, %v2310
      %v2327 = vadd.f32 %v2247, %v2311
      %v2328 = vadd.f32 %v2248, %v2312
      %v2329 = vadd.f32 %v2249, %v2313
      %v2330 = vadd.f32 %v2250, %v2314
      %v2331 = vadd.f32 %v2251, %v2315
      %v2332 = vadd.f32 %v2252, %v2316
      %v2333 = vadd.f32 %v2253, %v2317
      %v2334 = vadd.f32 %v2254, %v2318
      %v2335 = vadd.f32 %v2255, %v2319
      %v2336 = vadd.f32 %v2256, %v2320
      %v2337 = vmul.f32 %v2321, 0.7978846
      %v2338 = vmul.f32 %v2322, 0.7978846
      %v2339 = vmul.f32 %v2323, 0.7978846
      %v2340 = vmul.f32 %v2324, 0.7978846
      %v2341 = vmul.f32 %v2325, 0.7978846
      %v2342 = vmul.f32 %v2326, 0.7978846
      %v2343 = vmul.f32 %v2327, 0.7978846
      %v2344 = vmul.f32 %v2328, 0.7978846
      %v2345 = vmul.f32 %v2329, 0.7978846
      %v2346 = vmul.f32 %v2330, 0.7978846
      %v2347 = vmul.f32 %v2331, 0.7978846
      %v2348 = vmul.f32 %v2332, 0.7978846
      %v2349 = vmul.f32 %v2333, 0.7978846
      %v2350 = vmul.f32 %v2334, 0.7978846
      %v2351 = vmul.f32 %v2335, 0.7978846
      %v2352 = vmul.f32 %v2336, 0.7978846
      %v2353 = vtanh.pop %v2337
      %v2354 = vtanh.pop %v2338
      %v2355 = vtanh.pop %v2339
      %v2356 = vtanh.pop %v2340
      %v2357 = vtanh.pop %v2341
      %v2358 = vtanh.pop %v2342
      %v2359 = vtanh.pop %v2343
      %v2360 = vtanh.pop %v2344
      %v2361 = vtanh.pop %v2345
      %v2362 = vtanh.pop %v2346
      %v2363 = vtanh.pop %v2347
      %v2364 = vtanh.pop %v2348
      %v2365 = vtanh.pop %v2349
      %v2366 = vtanh.pop %v2350
      %v2367 = vtanh.pop %v2351
      %v2368 = vtanh.pop %v2352
      %v2369 = vadd.f32 %v2353, 1.0
      %v2370 = vadd.f32 %v2354, 1.0
      %v2371 = vadd.f32 %v2355, 1.0
      %v2372 = vadd.f32 %v2356, 1.0
      %v2373 = vadd.f32 %v2357, 1.0
      %v2374 = vadd.f32 %v2358, 1.0
      %v2375 = vadd.f32 %v2359, 1.0
      %v2376 = vadd.f32 %v2360, 1.0
      %v2377 = vadd.f32 %v2361, 1.0
      %v2378 = vadd.f32 %v2362, 1.0
      %v2379 = vadd.f32 %v2363, 1.0
      %v2380 = vadd.f32 %v2364, 1.0
      %v2381 = vadd.f32 %v2365, 1.0
      %v2382 = vadd.f32 %v2366, 1.0
      %v2383 = vadd.f32 %v2367, 1.0
      %v2384 = vadd.f32 %v2368, 1.0
      %v2385 = vmul.f32 %v2257, %v2369
      %v2386 = vmul.f32 %v2258, %v2370
      %v2387 = vmul.f32 %v2259, %v2371
      %v2388 = vmul.f32 %v2260, %v2372
      %v2389 = vmul.f32 %v2261, %v2373
      %v2390 = vmul.f32 %v2262, %v2374
      %v2391 = vmul.f32 %v2263, %v2375
      %v2392 = vmul.f32 %v2264, %v2376
      %v2393 = vmul.f32 %v2265, %v2377
      %v2394 = vmul.f32 %v2266, %v2378
      %v2395 = vmul.f32 %v2267, %v2379
      %v2396 = vmul.f32 %v2268, %v2380
      %v2397 = vmul.f32 %v2269, %v2381
      %v2398 = vmul.f32 %v2270, %v2382
      %v2399 = vmul.f32 %v2271, %v2383
      %v2400 = vmul.f32 %v2272, %v2384
      %v2401 = vld [vmem:[%s12] sm:$0xff]
      %v2402 = vld [vmem:[%s12 + $0x8] sm:$0xff]
      %v2403 = vld [vmem:[%s12 + $0x10] sm:$0xff]
      %v2404 = vld [vmem:[%s12 + $0x18] sm:$0xff]
      %v2405 = vld [vmem:[%s12 + $0x20] sm:$0xff]
      %v2406 = vld [vmem:[%s12 + $0x28] sm:$0xff]
      %v2407 = vld [vmem:[%s12 + $0x30] sm:$0xff]
      %v2408 = vld [vmem:[%s12 + $0x38] sm:$0xff]
      %v2409 = vld [vmem:[%s12 + $0x40] sm:$0xff]
      %v2410 = vld [vmem:[%s12 + $0x48] sm:$0xff]
      %v2411 = vld [vmem:[%s12 + $0x50] sm:$0xff]
      %v2412 = vld [vmem:[%s12 + $0x58] sm:$0xff]
      %v2413 = vld [vmem:[%s12 + $0x60] sm:$0xff]
      %v2414 = vld [vmem:[%s12 + $0x68] sm:$0xff]
      %v2415 = vld [vmem:[%s12 + $0x70] sm:$0xff]
      %v2416 = vld [vmem:[%s12 + $0x78] sm:$0xff]
      %v2417 = vld [vmem:[%s13] sm:$0x1]
      %v2419 = vlaneseq
      %v2420 = vshrl.u32 %v2419, 7
      %v2421 = vsub.s32 0, %v2420
      %v2422 = vrot.slane %v2417, %v2421
      %2424 = vmatprep.subr.mxu0 0.0
      %2425 = vmatpush1.msra.mxu0 %v2416
      %2426 = vmatprep.subr.mxu0 0.0
      %2427 = vmatpush1.msra.mxu0 %v2415
      %2428 = vmatprep.subr.mxu0 0.0
      %2429 = vmatpush1.msra.mxu0 %v2414
      %2430 = vmatprep.subr.mxu0 0.0
      %2431 = vmatpush1.msra.mxu0 %v2413
      %2432 = vmatprep.subr.mxu0 0.0
      %2433 = vmatpush1.msra.mxu0 %v2412
      %2434 = vmatprep.subr.mxu0 0.0
      %2435 = vmatpush1.msra.mxu0 %v2411
      %2436 = vmatprep.subr.mxu0 0.0
      %2437 = vmatpush1.msra.mxu0 %v2410
      %2438 = vmatprep.subr.mxu0 0.0
      %2439 = vmatpush1.msra.mxu0 %v2409
      %2440 = vmatprep.subr.mxu0 0.0
      %2441 = vmatpush1.msra.mxu0 %v2408
      %2442 = vmatprep.subr.mxu0 0.0
      %2443 = vmatpush1.msra.mxu0 %v2407
      %2444 = vmatprep.subr.mxu0 0.0
      %2445 = vmatpush1.msra.mxu0 %v2406
      %2446 = vmatprep.subr.mxu0 0.0
      %2447 = vmatpush1.msra.mxu0 %v2405
      %2448 = vmatprep.subr.mxu0 0.0
      %2449 = vmatpush1.msra.mxu0 %v2404
      %2450 = vmatprep.subr.mxu0 0.0
      %2451 = vmatpush1.msra.mxu0 %v2403
      %2452 = vmatprep.subr.mxu0 0.0
      %2453 = vmatpush1.msra.mxu0 %v2402
      %2454 = vmatprep.subr.mxu0 0.0
      %2455 = vmatpush1.msra.mxu0 %v2401
      %2456 = vmatprep.subr.mxu0 0.0
      %2457 = vmatpush2.msra.mxu0 0.0
      %2458 = vmatprep.subr.mxu0 0.0
      %2459 = vmatpush2.msra.mxu0 0.0
      %2460 = vmatprep.subr.mxu0 0.0
      %2461 = vmatpush2.msra.mxu0 0.0
      %2462 = vmatprep.subr.mxu0 0.0
      %2463 = vmatpush2.msra.mxu0 0.0
      %2464 = vmatprep.subr.mxu0 0.0
      %2465 = vmatpush2.msra.mxu0 0.0
      %2466 = vmatprep.subr.mxu0 0.0
      %2467 = vmatpush2.msra.mxu0 0.0
      %2468 = vmatprep.subr.mxu0 0.0
      %2469 = vmatpush2.msra.mxu0 0.0
      %2470 = vmatprep.subr.mxu0 0.0
      %2471 = vmatpush2.msra.mxu0 0.0
      %2472 = vmatprep.subr.mxu0 0.0
      %2473 = vmatpush2.msra.mxu0 0.0
      %2474 = vmatprep.subr.mxu0 0.0
      %2475 = vmatpush2.msra.mxu0 0.0
      %2476 = vmatprep.subr.mxu0 0.0
      %2477 = vmatpush2.msra.mxu0 0.0
      %2478 = vmatprep.subr.mxu0 0.0
      %2479 = vmatpush2.msra.mxu0 0.0
      %2480 = vmatprep.subr.mxu0 0.0
      %2481 = vmatpush2.msra.mxu0 0.0
      %2482 = vmatprep.subr.mxu0 0.0
      %2483 = vmatpush2.msra.mxu0 0.0
      %2484 = vmatprep.subr.mxu0 0.0
      %2485 = vmatpush2.msra.mxu0 0.0
      %2486 = vmatprep.subr.mxu0 0.0
      %2487 = vmatpush2.msra.mxu0 0.0
      %2488 = vmatprep.mubr.f32.mxu0 0.0
      %2489 = vmatmul.mubr.f32.gmra.mxu0 %v2385
      %v2490 = vpop.f32.mrf.mxu0
      %v2491 = vadd.f32 %v2422, %v2490
      %v2492 = vpop.f32.mrf.mxu0
      %2493 = vmatprep.mubr.f32.mxu0 0.0
      %2494 = vmatmul.mubr.f32.gmra.mxu0 %v2386
      %v2495 = vpop.f32.mrf.mxu0
      %v2496 = vadd.f32 %v2422, %v2495
      %v2497 = vpop.f32.mrf.mxu0
      %2498 = vmatprep.mubr.f32.mxu0 0.0
      %2499 = vmatmul.mubr.f32.gmra.mxu0 %v2387
      %v2500 = vpop.f32.mrf.mxu0
      %v2501 = vadd.f32 %v2422, %v2500
      %v2502 = vpop.f32.mrf.mxu0
      %2503 = vmatprep.mubr.f32.mxu0 0.0
      %2504 = vmatmul.mubr.f32.gmra.mxu0 %v2388
      %v2505 = vpop.f32.mrf.mxu0
      %v2506 = vadd.f32 %v2422, %v2505
      %v2507 = vpop.f32.mrf.mxu0
      %2508 = vmatprep.mubr.f32.mxu0 0.0
      %2509 = vmatmul.mubr.f32.gmra.mxu0 %v2389
      %v2510 = vpop.f32.mrf.mxu0
      %v2511 = vadd.f32 %v2422, %v2510
      %v2512 = vpop.f32.mrf.mxu0
      %2513 = vmatprep.mubr.f32.mxu0 0.0
      %2514 = vmatmul.mubr.f32.gmra.mxu0 %v2390
      %v2515 = vpop.f32.mrf.mxu0
      %v2516 = vadd.f32 %v2422, %v2515
      %v2517 = vpop.f32.mrf.mxu0
      %2518 = vmatprep.mubr.f32.mxu0 0.0
      %2519 = vmatmul.mubr.f32.gmra.mxu0 %v2391
      %v2520 = vpop.f32.mrf.mxu0
      %v2521 = vadd.f32 %v2422, %v2520
      %v2522 = vpop.f32.mrf.mxu0
      %2523 = vmatprep.mubr.f32.mxu0 0.0
      %2524 = vmatmul.mubr.f32.gmra.mxu0 %v2392
      %v2525 = vpop.f32.mrf.mxu0
      %v2526 = vadd.f32 %v2422, %v2525
      %v2527 = vpop.f32.mrf.mxu0
      %2528 = vmatprep.mubr.f32.mxu0 0.0
      %2529 = vmatmul.mubr.f32.gmra.mxu0 %v2393
      %v2530 = vpop.f32.mrf.mxu0
      %v2531 = vadd.f32 %v2422, %v2530
      %v2532 = vpop.f32.mrf.mxu0
      %2533 = vmatprep.mubr.f32.mxu0 0.0
      %2534 = vmatmul.mubr.f32.gmra.mxu0 %v2394
      %v2535 = vpop.f32.mrf.mxu0
      %v2536 = vadd.f32 %v2422, %v2535
      %v2537 = vpop.f32.mrf.mxu0
      %2538 = vmatprep.mubr.f32.mxu0 0.0
      %2539 = vmatmul.mubr.f32.gmra.mxu0 %v2395
      %v2540 = vpop.f32.mrf.mxu0
      %v2541 = vadd.f32 %v2422, %v2540
      %v2542 = vpop.f32.mrf.mxu0
      %2543 = vmatprep.mubr.f32.mxu0 0.0
      %2544 = vmatmul.mubr.f32.gmra.mxu0 %v2396
      %v2545 = vpop.f32.mrf.mxu0
      %v2546 = vadd.f32 %v2422, %v2545
      %v2547 = vpop.f32.mrf.mxu0
      %2548 = vmatprep.mubr.f32.mxu0 0.0
      %2549 = vmatmul.mubr.f32.gmra.mxu0 %v2397
      %v2550 = vpop.f32.mrf.mxu0
      %v2551 = vadd.f32 %v2422, %v2550
      %v2552 = vpop.f32.mrf.mxu0
      %2553 = vmatprep.mubr.f32.mxu0 0.0
      %2554 = vmatmul.mubr.f32.gmra.mxu0 %v2398
      %v2555 = vpop.f32.mrf.mxu0
      %v2556 = vadd.f32 %v2422, %v2555
      %v2557 = vpop.f32.mrf.mxu0
      %2558 = vmatprep.mubr.f32.mxu0 0.0
      %2559 = vmatmul.mubr.f32.gmra.mxu0 %v2399
      %v2560 = vpop.f32.mrf.mxu0
      %v2561 = vadd.f32 %v2422, %v2560
      %v2562 = vpop.f32.mrf.mxu0
      %2563 = vmatprep.mubr.f32.mxu0 0.0
      %2564 = vmatmul.mubr.f32.gmra.mxu0 %v2400
      %v2565 = vpop.f32.mrf.mxu0
      %v2566 = vadd.f32 %v2422, %v2565
      %v2567 = vpop.f32.mrf.mxu0
      %2568 = vdwg.mxu0
      %v2569 = vld [vmem:[%s495] sm:$0xff]
      %v2570 = vld [vmem:[%s495 + $0x8] sm:$0xff]
      %v2571 = vld [vmem:[%s495 + $0x10] sm:$0xff]
      %v2572 = vld [vmem:[%s495 + $0x18] sm:$0xff]
      %v2573 = vld [vmem:[%s495 + $0x20] sm:$0xff]
      %v2574 = vld [vmem:[%s495 + $0x28] sm:$0xff]
      %v2575 = vld [vmem:[%s495 + $0x30] sm:$0xff]
      %v2576 = vld [vmem:[%s495 + $0x38] sm:$0xff]
      %v2577 = vld [vmem:[%s495 + $0x40] sm:$0xff]
      %v2578 = vld [vmem:[%s495 + $0x48] sm:$0xff]
      %v2579 = vld [vmem:[%s495 + $0x50] sm:$0xff]
      %v2580 = vld [vmem:[%s495 + $0x58] sm:$0xff]
      %v2581 = vld [vmem:[%s495 + $0x60] sm:$0xff]
      %v2582 = vld [vmem:[%s495 + $0x68] sm:$0xff]
      %v2583 = vld [vmem:[%s495 + $0x70] sm:$0xff]
      %v2584 = vld [vmem:[%s495 + $0x78] sm:$0xff]
      %v2585 = vadd.f32 %v2491, %v2569
      %v2586 = vadd.f32 %v2496, %v2570
      %v2587 = vadd.f32 %v2501, %v2571
      %v2588 = vadd.f32 %v2506, %v2572
      %v2589 = vadd.f32 %v2511, %v2573
      %v2590 = vadd.f32 %v2516, %v2574
      %v2591 = vadd.f32 %v2521, %v2575
      %v2592 = vadd.f32 %v2526, %v2576
      %v2593 = vadd.f32 %v2531, %v2577
      %v2594 = vadd.f32 %v2536, %v2578
      %v2595 = vadd.f32 %v2541, %v2579
      %v2596 = vadd.f32 %v2546, %v2580
      %v2597 = vadd.f32 %v2551, %v2581
      %v2598 = vadd.f32 %v2556, %v2582
      %v2599 = vadd.f32 %v2561, %v2583
      %v2600 = vadd.f32 %v2566, %v2584
      %vm2601 = vcmask 56320
      %2602 = vst.msk [vmem:[%s513] sm:$0xff] %vm2601, %v2585
      %2603 = vst.msk [vmem:[%s513 + $0x8] sm:$0xff] %vm2601, %v2586
      %2604 = vst.msk [vmem:[%s513 + $0x10] sm:$0xff] %vm2601, %v2587
      %2605 = vst.msk [vmem:[%s513 + $0x18] sm:$0xff] %vm2601, %v2588
      %2606 = vst.msk [vmem:[%s513 + $0x20] sm:$0xff] %vm2601, %v2589
      %2607 = vst.msk [vmem:[%s513 + $0x28] sm:$0xff] %vm2601, %v2590
      %2608 = vst.msk [vmem:[%s513 + $0x30] sm:$0xff] %vm2601, %v2591
      %2609 = vst.msk [vmem:[%s513 + $0x38] sm:$0xff] %vm2601, %v2592
      %2610 = vst.msk [vmem:[%s513 + $0x40] sm:$0xff] %vm2601, %v2593
      %2611 = vst.msk [vmem:[%s513 + $0x48] sm:$0xff] %vm2601, %v2594
      %2612 = vst.msk [vmem:[%s513 + $0x50] sm:$0xff] %vm2601, %v2595
      %2613 = vst.msk [vmem:[%s513 + $0x58] sm:$0xff] %vm2601, %v2596
      %2614 = vst.msk [vmem:[%s513 + $0x60] sm:$0xff] %vm2601, %v2597
      %2615 = vst.msk [vmem:[%s513 + $0x68] sm:$0xff] %vm2601, %v2598
      %2616 = vst.msk [vmem:[%s513 + $0x70] sm:$0xff] %vm2601, %v2599
      %2617 = vst.msk [vmem:[%s513 + $0x78] sm:$0xff] %vm2601, %v2600
      %s2618 = smul.u32 16, %s25
      %p2619 = scmp.lt.s32.totalorder %s2618, 31
      %s2620 = scalar_select %p2619, %s2618, 31
      %s2621 = smul.addr %s2620, 8
      %s2622 = scalar_lea.vmem %s14, %s2621
      // Predicated region
      $region77: #{tpu_custom_call.1} parent=75 // pred_check
        %p2623 = pneg %p352
      $region78: #{tpu_custom_call.1} parent=75 // pred_check_branch
        %2625 = sbr.rel (%p2623) target = $region80
      $region79: #{tpu_custom_call.1} parent=75 // pred_region
        %s2626 = smul.u32 16, %s25
      $region80: #{tpu_custom_call.1} parent=75 // pred_fallthru
        _
    $region76: #{tpu_custom_call.1} parent=5 // pred_fallthru
      _
    %p2627 = scmp.le.s32.totalorder 2, %s20
    // Predicated region
    $region81: #{tpu_custom_call.1} parent=5 // pred_check
      %p2628 = pneg %p2627
    $region82: #{tpu_custom_call.1} parent=5 // pred_check_branch
      %2630 = sbr.rel (%p2628) target = $region84
    $region83: #{tpu_custom_call.1} parent=5 // pred_region
      %s2631 = ssub.s32 %s20, 2
      // Predicated region
      $region85: #{tpu_custom_call.1} parent=83 // pred_check
        %p2632 = pneg %p358
      $region86: #{tpu_custom_call.1} parent=83 // pred_check_branch
        %2634 = sbr.rel (%p2632) target = $region88
      $region87: #{tpu_custom_call.1} parent=83 // pred_region
        %s2635 = smul.u32 16, %s26
        %p2636 = scmp.lt.s32.totalorder %s2635, 31
        %s2637 = scalar_select %p2636, %s2635, 31
        %s2638 = smul.addr %s2637, 8
        %s2639 = scalar_lea.vmem %s14, %s2638
      $region88: #{tpu_custom_call.1} parent=83 // pred_fallthru
        _
    $region84: #{tpu_custom_call.1} parent=5 // pred_fallthru
      _
  $region6: #{tpu_custom_call.1} parent=0 // loop_footer
    %s24 = sadd.s32 1, %s20
  $region7: #{tpu_custom_call.1} parent=0 // loop_footer_branch
    %19 = sbr.rel target = $region3
  $region8: #{tpu_custom_call.1} parent=0 // loop_exit
    _

</llo_original>
